<compile_context>
chip_gen: v5e
topology: v5e:2x2
jax: 0.10.0
libtpu: 0.0.40
codegen_flags: <defaults>
</compile_context>

<pallas_src>
import math

import jax
import jax.numpy as jnp
from jax import lax
from jax.experimental import pallas as pl
from jax.experimental.pallas import tpu as pltpu


def _attention_kernel(num_heads, head_dim, q_tile, seq_len, eps, use_bf16_exp):
    H, hd, TQ, L = num_heads, head_dim, q_tile, seq_len
    D = H * hd

    def kernel(q_ref, k_ref, v_ref, mask_ref,
               wq_ref, wo_ref, bo_ref, lnw_ref, lnb_ref,
               out_ref):
        q_in = q_ref[0]                                           # (TQ, D) f32 (residual)

        # Q projection (Wq pre-scaled by 1/sqrt(hd) in the wrapper), split heads.
        query = jnp.dot(q_in.astype(jnp.bfloat16), wq_ref[...],
                        preferred_element_type=jnp.float32)        # (TQ, D)
        qh = jnp.transpose(query.reshape(TQ, H, hd),
                           (1, 0, 2)).astype(jnp.bfloat16)         # (H, TQ, hd)

        # Scores: batched per-head contraction (head axis is the dot batch dim).
        scores = jnp.einsum('hqc,hkc->hqk', qh, k_ref[0],
                            preferred_element_type=jnp.float32)    # (H, TQ, L)
        scores = scores + mask_ref[0]                # bf16 mask, already * (-10000)
        scores = scores - jnp.max(scores, axis=-1, keepdims=True)

        if use_bf16_exp:
            p = jnp.exp(scores.astype(jnp.bfloat16))               # bf16 EUP (v6e/v7x)
        else:
            p = jnp.exp(scores).astype(jnp.bfloat16)               # f32 EUP (v5e/older)
        denom = jnp.sum(p, axis=-1, keepdims=True, dtype=jnp.float32)   # (H, TQ, 1)
        # TODO(synk): dropout on attention probs omitted (inference / eval mode)

        # PV on UNNORMALIZED p; normalize the much smaller ctx instead.
        ctx = jnp.einsum('hqk,hkc->hqc', p, v_ref[0],
                         preferred_element_type=jnp.float32)       # (H, TQ, hd)
        ctx = ctx * pl.reciprocal(denom, approx=True)

        # Output projection without a merge-heads relayout: Wo is (H, hd, D).
        outp = jnp.einsum('hqc,hcd->hqd', ctx.astype(jnp.bfloat16), wo_ref[...],
                          preferred_element_type=jnp.float32)      # (H, TQ, D)
        out = jnp.sum(outp, axis=0) + bo_ref[...]                  # (TQ, D)

        # Residual + LayerNorm (f32).  torch.var default is unbiased -> D - 1.
        x = out + q_in
        mu = jnp.mean(x, axis=-1, keepdims=True)
        var = jnp.sum((x - mu) * (x - mu), axis=-1, keepdims=True) * (1.0 / (D - 1))
        xn = (x - mu) * lax.rsqrt(var + eps)
        out_ref[0] = lnw_ref[...] * xn + lnb_ref[...]

    return kernel


def _device_kind():
    try:
        return jax.devices()[0].device_kind.lower()
    except Exception:
        return ""


def _pick_q_tile(L, num_heads, score_budget_bytes):
    # Per-tile f32 scores + exp temporaries dominate VMEM: ~2 * H * TQ * L * 4 B.
    for t in (512, 256, 128):
        if L >= t and L % t == 0 and 2 * num_heads * t * L * 4 <= score_budget_bytes:
            return t
    if L > 128 and L % 128 == 0:
        # TODO(synk): for very long L (esp. v7x 64 MiB VMEM) add a KV-tile grid
        # axis with flash-style online softmax instead of materializing (H,TQ,L).
        return 128
    return L


def _build_call(B, L, D, H, hd, TQ, n_q, eps, use_bf16_exp, vmem_limit,
                single_buffer_weights):
    kernel = _attention_kernel(H, hd, TQ, L, eps, use_bf16_exp)

    def const_spec(shape):
        nargs = len(shape)
        idx = lambda b, qi: (0,) * nargs
        if single_buffer_weights:
            # Loop-invariant: no need to double-buffer (saves VMEM, esp. on v7x).
            return pl.BlockSpec(shape, idx, pipeline_mode=pl.Buffered(1))
        return pl.BlockSpec(shape, idx)

    q_spec = pl.BlockSpec((1, TQ, D), lambda b, qi: (b, qi, 0))
    kv_spec = pl.BlockSpec((1, H, L, hd), lambda b, qi: (b, 0, 0, 0))
    mask_spec = pl.BlockSpec((1, TQ, L), lambda b, qi: (b, qi, 0))
    out_spec = pl.BlockSpec((1, TQ, D), lambda b, qi: (b, qi, 0))

    return pl.pallas_call(
        kernel,
        out_shape=jax.ShapeDtypeStruct((B, L, D), jnp.float32),
        grid_spec=pltpu.PrefetchScalarGridSpec(
            num_scalar_prefetch=0,
            grid=(B, n_q),
            in_specs=[q_spec, kv_spec, kv_spec, mask_spec,
                      const_spec((D, D)),          # Wq (pre-scaled), bf16
                      const_spec((H, hd, D)),      # Wo, head-split, bf16
                      const_spec((1, D)),          # output bias
                      const_spec((1, D)),          # LayerNorm weight
                      const_spec((1, D))],         # LayerNorm bias
            out_specs=out_spec),
        compiler_params=pltpu.CompilerParams(
            dimension_semantics=("parallel", "parallel"),
            vmem_limit_bytes=vmem_limit),
    )


def attention_forward(q, k, v, attention_mask, params, num_heads, eps=1e-5):
    """q, k, v: (B, L, D) f32; attention_mask: (B, L, L). Returns (B, L, D) f32."""
    B, L, D = q.shape
    assert D % num_heads == 0
    hd = D // num_heads

    kind = _device_kind()
    is_v7 = ("v7" in kind) or ("7x" in kind)
    is_v6 = "v6" in kind
    use_bf16_exp = is_v6 or is_v7          # bf16-capable EUP only on v6e / v7x
    if is_v7:
        vmem_limit, score_budget = 40 * 2**20, 12 * 2**20   # 64 MiB physical VMEM
    elif is_v6:
        vmem_limit, score_budget = 96 * 2**20, 32 * 2**20   # 128 MiB physical VMEM
    else:
        vmem_limit, score_budget = 64 * 2**20, 24 * 2**20

    TQ = _pick_q_tile(L, num_heads, score_budget)
    n_q = L // TQ

    wq_t, wk_t, wv_t, wo_t, bo, ln_w, ln_b = params   # weights in (D_in, D_out) layout

    # Fold softmax scale into Wq; fold -10000 into the mask (shipped as bf16).
    scale = 1.0 / math.sqrt(hd)
    wq_b = (wq_t * scale).astype(jnp.bfloat16)
    wo_h = wo_t.reshape(num_heads, hd, D).astype(jnp.bfloat16)
    bo2 = bo.reshape(1, D).astype(jnp.float32)
    lnw2 = ln_w.reshape(1, D).astype(jnp.float32)
    lnb2 = ln_b.reshape(1, D).astype(jnp.float32)
    mask_b = (attention_mask.astype(jnp.float32) * (-10000.0)).astype(jnp.bfloat16)

    # K/V projection + head-major relayout hoisted out of the kernel (plain XLA).
    kproj = jnp.dot(k.astype(jnp.bfloat16), wk_t.astype(jnp.bfloat16),
                    preferred_element_type=jnp.float32)             # (B, L, D)
    vproj = jnp.dot(v.astype(jnp.bfloat16), wv_t.astype(jnp.bfloat16),
                    preferred_element_type=jnp.float32)
    kh = jnp.transpose(kproj.reshape(B, L, num_heads, hd),
                       (0, 2, 1, 3)).astype(jnp.bfloat16)           # (B, H, L, hd)
    vh = jnp.transpose(vproj.reshape(B, L, num_heads, hd),
                       (0, 2, 1, 3)).astype(jnp.bfloat16)

    args = (q.astype(jnp.float32), kh, vh, mask_b, wq_b, wo_h, bo2, lnw2, lnb2)
    try:
        call = _build_call(B, L, D, num_heads, hd, TQ, n_q, eps,
                           use_bf16_exp, vmem_limit, single_buffer_weights=True)
        return call(*args)
    except Exception:
        # TODO(synk): pl.Buffered(1) (single-buffered loop-invariant weights)
        # unsupported on this jax build; fall back to default double-buffering.
        call = _build_call(B, L, D, num_heads, hd, TQ, n_q, eps,
                           use_bf16_exp, vmem_limit, single_buffer_weights=False)
        return call(*args)


def make_params(key, D):
    """Deterministic synthetic parameters, pre-transposed to (D_in, D_out)."""
    ks = jax.random.split(key, 5)
    s = 1.0 / math.sqrt(D)
    wq_t = jax.random.uniform(ks[0], (D, D), jnp.float32, -s, s)
    wk_t = jax.random.uniform(ks[1], (D, D), jnp.float32, -s, s)
    wv_t = jax.random.uniform(ks[2], (D, D), jnp.float32, -s, s)
    wo_t = jax.random.uniform(ks[3], (D, D), jnp.float32, -s, s)
    bo = jax.random.uniform(ks[4], (D,), jnp.float32, -s, s)
    ln_w = jnp.ones((D,), jnp.float32)
    ln_b = jnp.zeros((D,), jnp.float32)
    return (wq_t, wk_t, wv_t, wo_t, bo, ln_w, ln_b)


def attention_reference(q, k, v, attention_mask, params, num_heads, eps=1e-5):
    """Pure-JAX f32 reference mirroring the PyTorch module (dropout = identity)."""
    wq_t, wk_t, wv_t, wo_t, bo, ln_w, ln_b = params
    B, L, D = q.shape
    hd = D // num_heads
    mask = attention_mask * (-10000.0)

    def heads(x):
        return x.reshape(B, L, num_heads, hd).transpose(0, 2, 1, 3)

    Q = heads(q @ wq_t)
    K = heads(k @ wk_t)
    V = heads(v @ wv_t)
    scores = jnp.einsum("bhqd,bhkd->bhqk", Q, K) / math.sqrt(hd)
    scores = scores + mask[:, None]
    probs = jax.nn.softmax(scores, axis=-1)
    ctx = jnp.einsum("bhqk,bhkd->bhqd", probs, V)
    hidden = ctx.transpose(0, 2, 1, 3).reshape(B, L, D)
    out = hidden @ wo_t + bo
    x = out + q
    mu = jnp.mean(x, axis=-1, keepdims=True)
    var = jnp.sum((x - mu) ** 2, axis=-1, keepdims=True) / (D - 1)
    return ln_w * ((x - mu) / jnp.sqrt(var + eps)) + ln_b


if __name__ == "__main__":
    B, L, D, H = 2, 8, 32, 4

    key = jax.random.PRNGKey(0)
    kq, kk, kv, kp = jax.random.split(key, 4)
    q = jax.random.normal(kq, (B, L, D), jnp.float32)
    k = jax.random.normal(kk, (B, L, D), jnp.float32)
    v = jax.random.normal(kv, (B, L, D), jnp.float32)
    # attention_mask: 1 = masked position (module multiplies it by -10000)
    attention_mask = jnp.zeros((B, L, L), jnp.float32).at[:, :, L - 2:].set(1.0)

    params = make_params(kp, D)

    out = attention_forward(q, k, v, attention_mask, params, num_heads=H)
    out = jax.block_until_ready(out)

    ref = attention_reference(q, k, v, attention_mask, params, num_heads=H)
    assert out.shape == (B, L, D)
    # bf16 MXU inputs / bf16 mask / approx reciprocal -> looser than f32 1e-4.
    assert jnp.allclose(out, ref, atol=5e-2, rtol=5e-2), \
        f"max abs err {jnp.max(jnp.abs(out - ref))}"

    print("KERNEL_OK")
</pallas_src>

<mosaic_0001>
module attributes {stable_mosaic.version = 11 : i64} {
  func.func @kernel(%arg0: i32, %arg1: i32, %arg2: memref<1x8x32xf32, #tpu.memory_space<vmem>>, %arg3: memref<1x4x8x8xbf16, #tpu.memory_space<vmem>>, %arg4: memref<1x4x8x8xbf16, #tpu.memory_space<vmem>>, %arg5: memref<1x8x8xbf16, #tpu.memory_space<vmem>>, %arg6: memref<32x32xbf16, #tpu.memory_space<vmem>>, %arg7: memref<4x8x32xbf16, #tpu.memory_space<vmem>>, %arg8: memref<1x32xf32, #tpu.memory_space<vmem>>, %arg9: memref<1x32xf32, #tpu.memory_space<vmem>>, %arg10: memref<1x32xf32, #tpu.memory_space<vmem>>, %arg11: memref<1x8x32xf32, #tpu.memory_space<vmem>>) attributes {dimension_semantics = [#tpu.dimension_semantics<parallel>, #tpu.dimension_semantics<parallel>], iteration_bounds = array<i64: 2, 1>, scalar_prefetch = 0 : i64, scratch_operands = 0 : i64, tpu.core_type = #tpu.core_type<tc>, window_params = [{transform_indices = @transform_0, window_bounds = array<i64: 1, 8, 32>}, {transform_indices = @transform_1, window_bounds = array<i64: 1, 4, 8, 8>}, {transform_indices = @transform_2, window_bounds = array<i64: 1, 4, 8, 8>}, {transform_indices = @transform_3, window_bounds = array<i64: 1, 8, 8>}, {pipeline_mode = #tpu.pipeline_mode<synchronous>, transform_indices = @transform_4, window_bounds = array<i64: 32, 32>}, {pipeline_mode = #tpu.pipeline_mode<synchronous>, transform_indices = @transform_5, window_bounds = array<i64: 4, 8, 32>}, {pipeline_mode = #tpu.pipeline_mode<synchronous>, transform_indices = @transform_6, window_bounds = array<i64: 1, 32>}, {pipeline_mode = #tpu.pipeline_mode<synchronous>, transform_indices = @transform_7, window_bounds = array<i64: 1, 32>}, {pipeline_mode = #tpu.pipeline_mode<synchronous>, transform_indices = @transform_8, window_bounds = array<i64: 1, 32>}, {transform_indices = @transform_9, window_bounds = array<i64: 1, 8, 32>}]} {
    %c0 = arith.constant 0 : index
    %c0_0 = arith.constant 0 : index
    %c0_1 = arith.constant 0 : index
    %0 = vector.load %arg2[%c0, %c0_0, %c0_1] : memref<1x8x32xf32, #tpu.memory_space<vmem>>, vector<1x8x32xf32>
    %1 = vector.shape_cast %0 : vector<1x8x32xf32> to vector<8x32xf32>
    %2 = arith.truncf %1 : vector<8x32xf32> to vector<8x32xbf16>
    %c0_2 = arith.constant 0 : index
    %c0_3 = arith.constant 0 : index
    %3 = vector.load %arg6[%c0_2, %c0_3] : memref<32x32xbf16, #tpu.memory_space<vmem>>, vector<32x32xbf16>
    %cst = arith.constant dense<0.000000e+00> : vector<8x32xf32>
    %4 = tpu.matmul %2, %3, %cst {dimension_numbers = #tpu.dot_dimension_numbers<[1], [0], [0], [1], [0, 0, 1, 1], [], []>} : vector<8x32xbf16>, vector<32x32xbf16>, vector<8x32xf32> -> vector<8x32xf32>
    %5 = vector.shape_cast %4 : vector<8x32xf32> to vector<8x4x8xf32>
    %6 = tpu.transpose %5, [1, 0, 2] : vector<8x4x8xf32> -> vector<4x8x8xf32>
    %7 = arith.truncf %6 : vector<4x8x8xf32> to vector<4x8x8xbf16>
    %c0_4 = arith.constant 0 : index
    %c0_5 = arith.constant 0 : index
    %c0_6 = arith.constant 0 : index
    %c0_7 = arith.constant 0 : index
    %8 = vector.load %arg3[%c0_4, %c0_5, %c0_6, %c0_7] : memref<1x4x8x8xbf16, #tpu.memory_space<vmem>>, vector<1x4x8x8xbf16>
    %9 = vector.shape_cast %8 : vector<1x4x8x8xbf16> to vector<4x8x8xbf16>
    "tpu.trace_start"() <{level = 10 : i32, message = "hqc,hkc->hqk"}> : () -> ()
    %cst_8 = arith.constant dense<0.000000e+00> : vector<4x8x8xf32>
    %10 = tpu.matmul %7, %9, %cst_8 {dimension_numbers = #tpu.dot_dimension_numbers<[2], [2], [1], [1], [0, 0, 0, 1, 1, 1], [0], [0]>} : vector<4x8x8xbf16>, vector<4x8x8xbf16>, vector<4x8x8xf32> -> vector<4x8x8xf32>
    "tpu.trace_stop"() : () -> ()
    %c0_9 = arith.constant 0 : index
    %c0_10 = arith.constant 0 : index
    %c0_11 = arith.constant 0 : index
    %11 = vector.load %arg5[%c0_9, %c0_10, %c0_11] : memref<1x8x8xbf16, #tpu.memory_space<vmem>>, vector<1x8x8xbf16>
    %12 = vector.shape_cast %11 : vector<1x8x8xbf16> to vector<8x8xbf16>
    %13 = arith.extf %12 : vector<8x8xbf16> to vector<8x8xf32>
    %14 = vector.shape_cast %13 : vector<8x8xf32> to vector<1x8x8xf32>
    %15 = vector.broadcast %14 : vector<1x8x8xf32> to vector<4x8x8xf32>
    %16 = arith.addf %10, %15 : vector<4x8x8xf32>
    %cst_12 = arith.constant dense<0xFF800000> : vector<4x8xf32>
    %17 = vector.multi_reduction <maximumf>, %16, %cst_12 [2] : vector<4x8x8xf32> to vector<4x8xf32>
    %18 = vector.shape_cast %17 : vector<4x8xf32> to vector<4x8x1xf32>
    %19 = vector.broadcast %18 : vector<4x8x1xf32> to vector<4x8x8xf32>
    %20 = arith.subf %16, %19 : vector<4x8x8xf32>
    %21 = math.exp %20 : vector<4x8x8xf32>
    %22 = arith.truncf %21 : vector<4x8x8xf32> to vector<4x8x8xbf16>
    %23 = arith.extf %22 : vector<4x8x8xbf16> to vector<4x8x8xf32>
    %cst_13 = arith.constant dense<0.000000e+00> : vector<4x8xf32>
    %24 = vector.multi_reduction <add>, %23, %cst_13 [2] : vector<4x8x8xf32> to vector<4x8xf32>
    %25 = vector.shape_cast %24 : vector<4x8xf32> to vector<4x8x1xf32>
    %c0_14 = arith.constant 0 : index
    %c0_15 = arith.constant 0 : index
    %c0_16 = arith.constant 0 : index
    %c0_17 = arith.constant 0 : index
    %26 = vector.load %arg4[%c0_14, %c0_15, %c0_16, %c0_17] : memref<1x4x8x8xbf16, #tpu.memory_space<vmem>>, vector<1x4x8x8xbf16>
    %27 = vector.shape_cast %26 : vector<1x4x8x8xbf16> to vector<4x8x8xbf16>
    "tpu.trace_start"() <{level = 10 : i32, message = "hqk,hkc->hqc"}> : () -> ()
    %cst_18 = arith.constant dense<0.000000e+00> : vector<4x8x8xf32>
    %28 = tpu.matmul %22, %27, %cst_18 {dimension_numbers = #tpu.dot_dimension_numbers<[2], [1], [1], [2], [0, 0, 0, 1, 1, 2], [0], [0]>} : vector<4x8x8xbf16>, vector<4x8x8xbf16>, vector<4x8x8xf32> -> vector<4x8x8xf32>
    "tpu.trace_stop"() : () -> ()
    %29 = tpu.reciprocal %25 {approx = true} : vector<4x8x1xf32> -> vector<4x8x1xf32>
    %30 = vector.broadcast %29 : vector<4x8x1xf32> to vector<4x8x8xf32>
    %31 = arith.mulf %28, %30 : vector<4x8x8xf32>
    %32 = arith.truncf %31 : vector<4x8x8xf32> to vector<4x8x8xbf16>
    %c0_19 = arith.constant 0 : index
    %c0_20 = arith.constant 0 : index
    %c0_21 = arith.constant 0 : index
    %33 = vector.load %arg7[%c0_19, %c0_20, %c0_21] : memref<4x8x32xbf16, #tpu.memory_space<vmem>>, vector<4x8x32xbf16>
    "tpu.trace_start"() <{level = 10 : i32, message = "hqc,hcd->hqd"}> : () -> ()
    %cst_22 = arith.constant dense<0.000000e+00> : vector<4x8x32xf32>
    %34 = tpu.matmul %32, %33, %cst_22 {dimension_numbers = #tpu.dot_dimension_numbers<[2], [1], [1], [2], [0, 0, 0, 1, 1, 2], [0], [0]>} : vector<4x8x8xbf16>, vector<4x8x32xbf16>, vector<4x8x32xf32> -> vector<4x8x32xf32>
    "tpu.trace_stop"() : () -> ()
    %cst_23 = arith.constant dense<0.000000e+00> : vector<8x32xf32>
    %35 = vector.multi_reduction <add>, %34, %cst_23 [0] : vector<4x8x32xf32> to vector<8x32xf32>
    %c0_24 = arith.constant 0 : index
    %c0_25 = arith.constant 0 : index
    %36 = vector.load %arg8[%c0_24, %c0_25] : memref<1x32xf32, #tpu.memory_space<vmem>>, vector<1x32xf32>
    %37 = vector.broadcast %36 : vector<1x32xf32> to vector<8x32xf32>
    %38 = arith.addf %35, %37 : vector<8x32xf32>
    %39 = arith.addf %38, %1 : vector<8x32xf32>
    %cst_26 = arith.constant dense<0.000000e+00> : vector<8xf32>
    %40 = vector.multi_reduction <add>, %39, %cst_26 [1] : vector<8x32xf32> to vector<8xf32>
    %41 = vector.shape_cast %40 : vector<8xf32> to vector<8x1xf32>
    %cst_27 = arith.constant 3.200000e+01 : f32
    %42 = vector.broadcast %cst_27 : f32 to vector<8x1xf32>
    %43 = arith.divf %41, %42 : vector<8x1xf32>
    %44 = vector.broadcast %43 : vector<8x1xf32> to vector<8x32xf32>
    %45 = arith.subf %39, %44 : vector<8x32xf32>
    %46 = vector.broadcast %43 : vector<8x1xf32> to vector<8x32xf32>
    %47 = arith.subf %39, %46 : vector<8x32xf32>
    %48 = arith.mulf %45, %47 : vector<8x32xf32>
    %cst_28 = arith.constant dense<0.000000e+00> : vector<8xf32>
    %49 = vector.multi_reduction <add>, %48, %cst_28 [1] : vector<8x32xf32> to vector<8xf32>
    %50 = vector.shape_cast %49 : vector<8xf32> to vector<8x1xf32>
    %cst_29 = arith.constant 0.0322580636 : f32
    %51 = vector.broadcast %cst_29 : f32 to vector<8x1xf32>
    %52 = arith.mulf %50, %51 : vector<8x1xf32>
    %53 = vector.broadcast %43 : vector<8x1xf32> to vector<8x32xf32>
    %54 = arith.subf %39, %53 : vector<8x32xf32>
    %cst_30 = arith.constant 9.99999974E-6 : f32
    %55 = vector.broadcast %cst_30 : f32 to vector<8x1xf32>
    %56 = arith.addf %52, %55 : vector<8x1xf32>
    %57 = math.rsqrt %56 : vector<8x1xf32>
    %58 = vector.broadcast %57 : vector<8x1xf32> to vector<8x32xf32>
    %59 = arith.mulf %54, %58 : vector<8x32xf32>
    %c0_31 = arith.constant 0 : index
    %c0_32 = arith.constant 0 : index
    %60 = vector.load %arg9[%c0_31, %c0_32] : memref<1x32xf32, #tpu.memory_space<vmem>>, vector<1x32xf32>
    %61 = vector.broadcast %60 : vector<1x32xf32> to vector<8x32xf32>
    %62 = arith.mulf %61, %59 : vector<8x32xf32>
    %c0_33 = arith.constant 0 : index
    %c0_34 = arith.constant 0 : index
    %63 = vector.load %arg10[%c0_33, %c0_34] : memref<1x32xf32, #tpu.memory_space<vmem>>, vector<1x32xf32>
    %64 = vector.broadcast %63 : vector<1x32xf32> to vector<8x32xf32>
    %65 = arith.addf %62, %64 : vector<8x32xf32>
    %c0_35 = arith.constant 0 : index
    %c0_36 = arith.constant 0 : index
    %c0_37 = arith.constant 0 : index
    %66 = vector.load %arg11[%c0_35, %c0_36, %c0_37] : memref<1x8x32xf32, #tpu.memory_space<vmem>>, vector<1x8x32xf32>
    %67 = vector.shape_cast %66 : vector<1x8x32xf32> to vector<8x32xf32>
    %68 = vector.shape_cast %65 : vector<8x32xf32> to vector<1x8x32xf32>
    tpu.vector_store %arg11[%c0_35, %c0_36, %c0_37], %68 {strides = array<i32>} : memref<1x8x32xf32, #tpu.memory_space<vmem>>, vector<1x8x32xf32>,
    return
  }
  func.func @transform_0(%arg0: i32, %arg1: i32) -> (i32, i32, i32) {
    %c0_i32 = arith.constant 0 : i32
    %c0_i32_0 = arith.constant 0 : i32
    return %arg0, %arg1, %c0_i32 : i32, i32, i32
  }
  func.func @transform_1(%arg0: i32, %arg1: i32) -> (i32, i32, i32, i32) {
    %c0_i32 = arith.constant 0 : i32
    %c0_i32_0 = arith.constant 0 : i32
    %c0_i32_1 = arith.constant 0 : i32
    %c0_i32_2 = arith.constant 0 : i32
    return %arg0, %c0_i32, %c0_i32_0, %c0_i32_1 : i32, i32, i32, i32
  }
  func.func @transform_2(%arg0: i32, %arg1: i32) -> (i32, i32, i32, i32) {
    %c0_i32 = arith.constant 0 : i32
    %c0_i32_0 = arith.constant 0 : i32
    %c0_i32_1 = arith.constant 0 : i32
    %c0_i32_2 = arith.constant 0 : i32
    return %arg0, %c0_i32, %c0_i32_0, %c0_i32_1 : i32, i32, i32, i32
  }
  func.func @transform_3(%arg0: i32, %arg1: i32) -> (i32, i32, i32) {
    %c0_i32 = arith.constant 0 : i32
    %c0_i32_0 = arith.constant 0 : i32
    return %arg0, %arg1, %c0_i32 : i32, i32, i32
  }
  func.func @transform_4(%arg0: i32, %arg1: i32) -> (i32, i32) {
    %c0_i32 = arith.constant 0 : i32
    %c0_i32_0 = arith.constant 0 : i32
    %c0_i32_1 = arith.constant 0 : i32
    return %c0_i32, %c0_i32_0 : i32, i32
  }
  func.func @transform_5(%arg0: i32, %arg1: i32) -> (i32, i32, i32) {
    %c0_i32 = arith.constant 0 : i32
    %c0_i32_0 = arith.constant 0 : i32
    %c0_i32_1 = arith.constant 0 : i32
    %c0_i32_2 = arith.constant 0 : i32
    return %c0_i32, %c0_i32_0, %c0_i32_1 : i32, i32, i32
  }
  func.func @transform_6(%arg0: i32, %arg1: i32) -> (i32, i32) {
    %c0_i32 = arith.constant 0 : i32
    %c0_i32_0 = arith.constant 0 : i32
    %c0_i32_1 = arith.constant 0 : i32
    return %c0_i32, %c0_i32_0 : i32, i32
  }
  func.func @transform_7(%arg0: i32, %arg1: i32) -> (i32, i32) {
    %c0_i32 = arith.constant 0 : i32
    %c0_i32_0 = arith.constant 0 : i32
    %c0_i32_1 = arith.constant 0 : i32
    return %c0_i32, %c0_i32_0 : i32, i32
  }
  func.func @transform_8(%arg0: i32, %arg1: i32) -> (i32, i32) {
    %c0_i32 = arith.constant 0 : i32
    %c0_i32_0 = arith.constant 0 : i32
    %c0_i32_1 = arith.constant 0 : i32
    return %c0_i32, %c0_i32_0 : i32, i32
  }
  func.func @transform_9(%arg0: i32, %arg1: i32) -> (i32, i32, i32) {
    %c0_i32 = arith.constant 0 : i32
    %c0_i32_0 = arith.constant 0 : i32
    return %arg0, %arg1, %c0_i32 : i32, i32, i32
  }
}

module attributes {stable_mosaic.version = 11 : i64} {
  func.func @kernel(%arg0: i32, %arg1: i32, %arg2: memref<1x8x32xf32, #tpu.memory_space<vmem>>, %arg3: memref<1x4x8x8xbf16, #tpu.memory_space<vmem>>, %arg4: memref<1x4x8x8xbf16, #tpu.memory_space<vmem>>, %arg5: memref<1x8x8xbf16, #tpu.memory_space<vmem>>, %arg6: memref<32x32xbf16, #tpu.memory_space<vmem>>, %arg7: memref<4x8x32xbf16, #tpu.memory_space<vmem>>, %arg8: memref<1x32xf32, #tpu.memory_space<vmem>>, %arg9: memref<1x32xf32, #tpu.memory_space<vmem>>, %arg10: memref<1x32xf32, #tpu.memory_space<vmem>>, %arg11: memref<1x8x32xf32, #tpu.memory_space<vmem>>) attributes {dimension_semantics = [#tpu.dimension_semantics<parallel>, #tpu.dimension_semantics<parallel>], iteration_bounds = array<i64: 2, 1>, scalar_prefetch = 0 : i64, scratch_operands = 0 : i64, tpu.core_type = #tpu.core_type<tc>, window_params = [{transform_indices = @transform_0, window_bounds = array<i64: 1, 8, 32>}, {transform_indices = @transform_1, window_bounds = array<i64: 1, 4, 8, 8>}, {transform_indices = @transform_2, window_bounds = array<i64: 1, 4, 8, 8>}, {transform_indices = @transform_3, window_bounds = array<i64: 1, 8, 8>}, {pipeline_mode = #tpu.pipeline_mode<synchronous>, transform_indices = @transform_4, window_bounds = array<i64: 32, 32>}, {pipeline_mode = #tpu.pipeline_mode<synchronous>, transform_indices = @transform_5, window_bounds = array<i64: 4, 8, 32>}, {pipeline_mode = #tpu.pipeline_mode<synchronous>, transform_indices = @transform_6, window_bounds = array<i64: 1, 32>}, {pipeline_mode = #tpu.pipeline_mode<synchronous>, transform_indices = @transform_7, window_bounds = array<i64: 1, 32>}, {pipeline_mode = #tpu.pipeline_mode<synchronous>, transform_indices = @transform_8, window_bounds = array<i64: 1, 32>}, {transform_indices = @transform_9, window_bounds = array<i64: 1, 8, 32>}]} {
    %c0 = arith.constant 0 : index
    %c0_0 = arith.constant 0 : index
    %c0_1 = arith.constant 0 : index
    %0 = vector.load %arg2[%c0, %c0_0, %c0_1] : memref<1x8x32xf32, #tpu.memory_space<vmem>>, vector<1x8x32xf32>
    %1 = vector.shape_cast %0 : vector<1x8x32xf32> to vector<8x32xf32>
    %2 = arith.truncf %1 : vector<8x32xf32> to vector<8x32xbf16>
    %c0_2 = arith.constant 0 : index
    %c0_3 = arith.constant 0 : index
    %3 = vector.load %arg6[%c0_2, %c0_3] : memref<32x32xbf16, #tpu.memory_space<vmem>>, vector<32x32xbf16>
    %cst = arith.constant dense<0.000000e+00> : vector<8x32xf32>
    %4 = tpu.matmul %2, %3, %cst {dimension_numbers = #tpu.dot_dimension_numbers<[1], [0], [0], [1], [0, 0, 1, 1], [], []>} : vector<8x32xbf16>, vector<32x32xbf16>, vector<8x32xf32> -> vector<8x32xf32>
    %5 = vector.shape_cast %4 : vector<8x32xf32> to vector<8x4x8xf32>
    %6 = tpu.transpose %5, [1, 0, 2] : vector<8x4x8xf32> -> vector<4x8x8xf32>
    %7 = arith.truncf %6 : vector<4x8x8xf32> to vector<4x8x8xbf16>
    %c0_4 = arith.constant 0 : index
    %c0_5 = arith.constant 0 : index
    %c0_6 = arith.constant 0 : index
    %c0_7 = arith.constant 0 : index
    %8 = vector.load %arg3[%c0_4, %c0_5, %c0_6, %c0_7] : memref<1x4x8x8xbf16, #tpu.memory_space<vmem>>, vector<1x4x8x8xbf16>
    %9 = vector.shape_cast %8 : vector<1x4x8x8xbf16> to vector<4x8x8xbf16>
    "tpu.trace_start"() <{level = 10 : i32, message = "hqc,hkc->hqk"}> : () -> ()
    %cst_8 = arith.constant dense<0.000000e+00> : vector<4x8x8xf32>
    %10 = tpu.matmul %7, %9, %cst_8 {dimension_numbers = #tpu.dot_dimension_numbers<[2], [2], [1], [1], [0, 0, 0, 1, 1, 1], [0], [0]>} : vector<4x8x8xbf16>, vector<4x8x8xbf16>, vector<4x8x8xf32> -> vector<4x8x8xf32>
    "tpu.trace_stop"() : () -> ()
    %c0_9 = arith.constant 0 : index
    %c0_10 = arith.constant 0 : index
    %c0_11 = arith.constant 0 : index
    %11 = vector.load %arg5[%c0_9, %c0_10, %c0_11] : memref<1x8x8xbf16, #tpu.memory_space<vmem>>, vector<1x8x8xbf16>
    %12 = vector.shape_cast %11 : vector<1x8x8xbf16> to vector<8x8xbf16>
    %13 = arith.extf %12 : vector<8x8xbf16> to vector<8x8xf32>
    %14 = vector.shape_cast %13 : vector<8x8xf32> to vector<1x8x8xf32>
    %15 = vector.broadcast %14 : vector<1x8x8xf32> to vector<4x8x8xf32>
    %16 = arith.addf %10, %15 : vector<4x8x8xf32>
    %cst_12 = arith.constant dense<0xFF800000> : vector<4x8xf32>
    %17 = vector.multi_reduction <maximumf>, %16, %cst_12 [2] : vector<4x8x8xf32> to vector<4x8xf32>
    %18 = vector.shape_cast %17 : vector<4x8xf32> to vector<4x8x1xf32>
    %19 = vector.broadcast %18 : vector<4x8x1xf32> to vector<4x8x8xf32>
    %20 = arith.subf %16, %19 : vector<4x8x8xf32>
    %21 = math.exp %20 : vector<4x8x8xf32>
    %22 = arith.truncf %21 : vector<4x8x8xf32> to vector<4x8x8xbf16>
    %23 = arith.extf %22 : vector<4x8x8xbf16> to vector<4x8x8xf32>
    %cst_13 = arith.constant dense<0.000000e+00> : vector<4x8xf32>
    %24 = vector.multi_reduction <add>, %23, %cst_13 [2] : vector<4x8x8xf32> to vector<4x8xf32>
    %25 = vector.shape_cast %24 : vector<4x8xf32> to vector<4x8x1xf32>
    %c0_14 = arith.constant 0 : index
    %c0_15 = arith.constant 0 : index
    %c0_16 = arith.constant 0 : index
    %c0_17 = arith.constant 0 : index
    %26 = vector.load %arg4[%c0_14, %c0_15, %c0_16, %c0_17] : memref<1x4x8x8xbf16, #tpu.memory_space<vmem>>, vector<1x4x8x8xbf16>
    %27 = vector.shape_cast %26 : vector<1x4x8x8xbf16> to vector<4x8x8xbf16>
    "tpu.trace_start"() <{level = 10 : i32, message = "hqk,hkc->hqc"}> : () -> ()
    %cst_18 = arith.constant dense<0.000000e+00> : vector<4x8x8xf32>
    %28 = tpu.matmul %22, %27, %cst_18 {dimension_numbers = #tpu.dot_dimension_numbers<[2], [1], [1], [2], [0, 0, 0, 1, 1, 2], [0], [0]>} : vector<4x8x8xbf16>, vector<4x8x8xbf16>, vector<4x8x8xf32> -> vector<4x8x8xf32>
    "tpu.trace_stop"() : () -> ()
    %29 = tpu.reciprocal %25 {approx = true} : vector<4x8x1xf32> -> vector<4x8x1xf32>
    %30 = vector.broadcast %29 : vector<4x8x1xf32> to vector<4x8x8xf32>
    %31 = arith.mulf %28, %30 : vector<4x8x8xf32>
    %32 = arith.truncf %31 : vector<4x8x8xf32> to vector<4x8x8xbf16>
    %c0_19 = arith.constant 0 : index
    %c0_20 = arith.constant 0 : index
    %c0_21 = arith.constant 0 : index
    %33 = vector.load %arg7[%c0_19, %c0_20, %c0_21] : memref<4x8x32xbf16, #tpu.memory_space<vmem>>, vector<4x8x32xbf16>
    "tpu.trace_start"() <{level = 10 : i32, message = "hqc,hcd->hqd"}> : () -> ()
    %cst_22 = arith.constant dense<0.000000e+00> : vector<4x8x32xf32>
    %34 = tpu.matmul %32, %33, %cst_22 {dimension_numbers = #tpu.dot_dimension_numbers<[2], [1], [1], [2], [0, 0, 0, 1, 1, 2], [0], [0]>} : vector<4x8x8xbf16>, vector<4x8x32xbf16>, vector<4x8x32xf32> -> vector<4x8x32xf32>
    "tpu.trace_stop"() : () -> ()
    %cst_23 = arith.constant dense<0.000000e+00> : vector<8x32xf32>
    %35 = vector.multi_reduction <add>, %34, %cst_23 [0] : vector<4x8x32xf32> to vector<8x32xf32>
    %c0_24 = arith.constant 0 : index
    %c0_25 = arith.constant 0 : index
    %36 = vector.load %arg8[%c0_24, %c0_25] : memref<1x32xf32, #tpu.memory_space<vmem>>, vector<1x32xf32>
    %37 = vector.broadcast %36 : vector<1x32xf32> to vector<8x32xf32>
    %38 = arith.addf %35, %37 : vector<8x32xf32>
    %39 = arith.addf %38, %1 : vector<8x32xf32>
    %cst_26 = arith.constant dense<0.000000e+00> : vector<8xf32>
    %40 = vector.multi_reduction <add>, %39, %cst_26 [1] : vector<8x32xf32> to vector<8xf32>
    %41 = vector.shape_cast %40 : vector<8xf32> to vector<8x1xf32>
    %cst_27 = arith.constant 3.200000e+01 : f32
    %42 = vector.broadcast %cst_27 : f32 to vector<8x1xf32>
    %43 = arith.divf %41, %42 : vector<8x1xf32>
    %44 = vector.broadcast %43 : vector<8x1xf32> to vector<8x32xf32>
    %45 = arith.subf %39, %44 : vector<8x32xf32>
    %46 = vector.broadcast %43 : vector<8x1xf32> to vector<8x32xf32>
    %47 = arith.subf %39, %46 : vector<8x32xf32>
    %48 = arith.mulf %45, %47 : vector<8x32xf32>
    %cst_28 = arith.constant dense<0.000000e+00> : vector<8xf32>
    %49 = vector.multi_reduction <add>, %48, %cst_28 [1] : vector<8x32xf32> to vector<8xf32>
    %50 = vector.shape_cast %49 : vector<8xf32> to vector<8x1xf32>
    %cst_29 = arith.constant 0.0322580636 : f32
    %51 = vector.broadcast %cst_29 : f32 to vector<8x1xf32>
    %52 = arith.mulf %50, %51 : vector<8x1xf32>
    %53 = vector.broadcast %43 : vector<8x1xf32> to vector<8x32xf32>
    %54 = arith.subf %39, %53 : vector<8x32xf32>
    %cst_30 = arith.constant 9.99999974E-6 : f32
    %55 = vector.broadcast %cst_30 : f32 to vector<8x1xf32>
    %56 = arith.addf %52, %55 : vector<8x1xf32>
    %57 = math.rsqrt %56 : vector<8x1xf32>
    %58 = vector.broadcast %57 : vector<8x1xf32> to vector<8x32xf32>
    %59 = arith.mulf %54, %58 : vector<8x32xf32>
    %c0_31 = arith.constant 0 : index
    %c0_32 = arith.constant 0 : index
    %60 = vector.load %arg9[%c0_31, %c0_32] : memref<1x32xf32, #tpu.memory_space<vmem>>, vector<1x32xf32>
    %61 = vector.broadcast %60 : vector<1x32xf32> to vector<8x32xf32>
    %62 = arith.mulf %61, %59 : vector<8x32xf32>
    %c0_33 = arith.constant 0 : index
    %c0_34 = arith.constant 0 : index
    %63 = vector.load %arg10[%c0_33, %c0_34] : memref<1x32xf32, #tpu.memory_space<vmem>>, vector<1x32xf32>
    %64 = vector.broadcast %63 : vector<1x32xf32> to vector<8x32xf32>
    %65 = arith.addf %62, %64 : vector<8x32xf32>
    %c0_35 = arith.constant 0 : index
    %c0_36 = arith.constant 0 : index
    %c0_37 = arith.constant 0 : index
    %66 = vector.load %arg11[%c0_35, %c0_36, %c0_37] : memref<1x8x32xf32, #tpu.memory_space<vmem>>, vector<1x8x32xf32>
    %67 = vector.shape_cast %66 : vector<1x8x32xf32> to vector<8x32xf32>
    %68 = vector.shape_cast %65 : vector<8x32xf32> to vector<1x8x32xf32>
    tpu.vector_store %arg11[%c0_35, %c0_36, %c0_37], %68 {strides = array<i32>} : memref<1x8x32xf32, #tpu.memory_space<vmem>>, vector<1x8x32xf32>,
    return
  }
  func.func @transform_0(%arg0: i32, %arg1: i32) -> (i32, i32, i32) {
    %c0_i32 = arith.constant 0 : i32
    %c0_i32_0 = arith.constant 0 : i32
    return %arg0, %arg1, %c0_i32 : i32, i32, i32
  }
  func.func @transform_1(%arg0: i32, %arg1: i32) -> (i32, i32, i32, i32) {
    %c0_i32 = arith.constant 0 : i32
    %c0_i32_0 = arith.constant 0 : i32
    %c0_i32_1 = arith.constant 0 : i32
    %c0_i32_2 = arith.constant 0 : i32
    return %arg0, %c0_i32, %c0_i32_0, %c0_i32_1 : i32, i32, i32, i32
  }
  func.func @transform_2(%arg0: i32, %arg1: i32) -> (i32, i32, i32, i32) {
    %c0_i32 = arith.constant 0 : i32
    %c0_i32_0 = arith.constant 0 : i32
    %c0_i32_1 = arith.constant 0 : i32
    %c0_i32_2 = arith.constant 0 : i32
    return %arg0, %c0_i32, %c0_i32_0, %c0_i32_1 : i32, i32, i32, i32
  }
  func.func @transform_3(%arg0: i32, %arg1: i32) -> (i32, i32, i32) {
    %c0_i32 = arith.constant 0 : i32
    %c0_i32_0 = arith.constant 0 : i32
    return %arg0, %arg1, %c0_i32 : i32, i32, i32
  }
  func.func @transform_4(%arg0: i32, %arg1: i32) -> (i32, i32) {
    %c0_i32 = arith.constant 0 : i32
    %c0_i32_0 = arith.constant 0 : i32
    %c0_i32_1 = arith.constant 0 : i32
    return %c0_i32, %c0_i32_0 : i32, i32
  }
  func.func @transform_5(%arg0: i32, %arg1: i32) -> (i32, i32, i32) {
    %c0_i32 = arith.constant 0 : i32
    %c0_i32_0 = arith.constant 0 : i32
    %c0_i32_1 = arith.constant 0 : i32
    %c0_i32_2 = arith.constant 0 : i32
    return %c0_i32, %c0_i32_0, %c0_i32_1 : i32, i32, i32
  }
  func.func @transform_6(%arg0: i32, %arg1: i32) -> (i32, i32) {
    %c0_i32 = arith.constant 0 : i32
    %c0_i32_0 = arith.constant 0 : i32
    %c0_i32_1 = arith.constant 0 : i32
    return %c0_i32, %c0_i32_0 : i32, i32
  }
  func.func @transform_7(%arg0: i32, %arg1: i32) -> (i32, i32) {
    %c0_i32 = arith.constant 0 : i32
    %c0_i32_0 = arith.constant 0 : i32
    %c0_i32_1 = arith.constant 0 : i32
    return %c0_i32, %c0_i32_0 : i32, i32
  }
  func.func @transform_8(%arg0: i32, %arg1: i32) -> (i32, i32) {
    %c0_i32 = arith.constant 0 : i32
    %c0_i32_0 = arith.constant 0 : i32
    %c0_i32_1 = arith.constant 0 : i32
    return %c0_i32, %c0_i32_0 : i32, i32
  }
  func.func @transform_9(%arg0: i32, %arg1: i32) -> (i32, i32, i32) {
    %c0_i32 = arith.constant 0 : i32
    %c0_i32_0 = arith.constant 0 : i32
    return %arg0, %arg1, %c0_i32 : i32, i32, i32
  }
}

</mosaic_0001>

<llo_original>
// kernel: tpu_custom_call.1
$region0: #{tpu_custom_call.1}
  #allocation0 [shape = 'u32[]', space=smem, size = 0x4, offset = 0x4, fixed_abs, tag = 'smem constant byte address 0x4 - core index']
  #allocation1 [shape = 'u32[72,128]{1,0:T(1,128)}', space=vmem, size = 0x9000, scoped, tag = 'internal scratch']
  %s0 = inlined_call_operand.hbm [shape: f32[2,8,32], index: 0, kind: input, shape index: {}]
  %s1 = inlined_call_operand.hbm [shape: bf16[2,4,8,8], index: 1, kind: input, shape index: {}]
  %s2 = inlined_call_operand.hbm [shape: bf16[2,4,8,8], index: 2, kind: input, shape index: {}]
  %s3 = inlined_call_operand.hbm [shape: bf16[2,8,8], index: 3, kind: input, shape index: {}]
  %s4 = inlined_call_operand.hbm [shape: bf16[32,32], index: 4, kind: input, shape index: {}]
  %s5 = inlined_call_operand.hbm [shape: bf16[4,8,32], index: 5, kind: input, shape index: {}]
  %s6 = inlined_call_operand.vmem [shape: f32[1,32], index: 6, kind: input, shape index: {}]
  %s7 = inlined_call_operand.vmem [shape: f32[1,32], index: 7, kind: input, shape index: {}]
  %s8 = inlined_call_operand.vmem [shape: f32[1,32], index: 8, kind: input, shape index: {}]
  %s9 = inlined_call_operand.hbm [shape: f32[2,8,32], index: 9, kind: output, shape index: {}]
  %s10 = sld [smem:[#allocation0]]
  $region93: #{tpu_custom_call.1} parent=0
    _
  %s12 = ssub.s32 1, %s10
  %s13 = scalar_select 0, %s12, %s10
  $region1: #{tpu_custom_call.1} parent=0
    #allocation2 [shape = 'u8[8192]{0}', space=vmem, size = 0x2000, scoped, tag = 'input window, operand 0']
    #allocation3 [shape = 's32[2]{0}', space=sflag, size = 0x8, scoped, tag = 'scoped memory for tpu_custom_call.1']
    #allocation4 [shape = 's32[2]{0}', space=sflag, size = 0x8, scoped, tag = 'scoped memory for tpu_custom_call.1']
    #allocation5 [shape = 'u8[16384]{0}', space=vmem, size = 0x4000, scoped, tag = 'input window, operand 1']
    #allocation6 [shape = 's32[2]{0}', space=sflag, size = 0x8, scoped, tag = 'scoped memory for tpu_custom_call.1']
    #allocation7 [shape = 'u8[16384]{0}', space=vmem, size = 0x4000, scoped, tag = 'input window, operand 2']
    #allocation8 [shape = 'u8[4096]{0}', space=vmem, size = 0x1000, scoped, tag = 'input window, operand 3']
    #allocation9 [shape = 's32[2]{0}', space=sflag, size = 0x8, scoped, tag = 'scoped memory for tpu_custom_call.1']
    #allocation10 [shape = 'u8[8192]{0}', space=vmem, size = 0x2000, scoped, tag = 'input window, operand 4, single buffered']
    #allocation11 [shape = 'u8[8192]{0}', space=vmem, size = 0x2000, scoped, tag = 'input window, operand 5, single buffered']
    #allocation12 [shape = 's32[1]{0}', space=sflag, size = 0x4, scoped, tag = 'scoped memory for tpu_custom_call.1']
    #allocation13 [shape = 'u8[8192]{0}', space=vmem, size = 0x2000, scoped, tag = 'output window, operand 0']
    %14 = vsyncpa [#allocation3], 0
    %s15 = scalar_lea.sflag [#allocation3], 1
    %16 = vsyncpa %s15, 0
    %17 = vsyncpa [#allocation6], 0
    %s18 = scalar_lea.sflag [#allocation6], 1
    %19 = vsyncpa %s18, 0
    %20 = vsyncpa [#allocation9], 0
    %s21 = scalar_lea.sflag [#allocation9], 1
    %22 = vsyncpa %s21, 0
    %23 = vsyncpa [#allocation12], 0
    %24 = vsyncpa [#allocation4], 0
    %s25 = scalar_lea.sflag [#allocation4], 1
    %26 = vsyncpa %s25, 0
    loop: start=0, step=1, limit=4
    $region2: #{tpu_custom_call.1} parent=1 // loop_pre_header
      _
    $region3: #{tpu_custom_call.1} parent=1 // loop_header
      %s28 = sphi 0, %s32
      %p29 = scmp.ge.s32.totalorder %s28, 4
      %s35 = sphi 0, %s47
      %s36 = sphi 0, %s43
      %s37 = sphi 0, %s35
      %s38 = sphi 0, %s36
      %s39 = sphi 0, %s37
      %s40 = sphi 0, %s38
      %s52 = sphi 0, %s54
      %s55 = sphi 0, %s52
      %s56 = sphi 0, %s55
      %s72 = sphi 0, %s56
      %s78 = sphi 0, %s80
      %s81 = sphi 0, %s78
      %s82 = sphi 0, %s81
      %s98 = sphi 0, %s82
      %s104 = sphi 0, %s106
      %s107 = sphi 0, %s104
      %s108 = sphi 0, %s107
      %s124 = sphi 0, %s108
      %s132 = sphi 0, %s134
      %s135 = sphi 0, %s132
      %s136 = sphi 0, %s135
      %s152 = sphi 0, %s136
      %s156 = sphi 0, %s156
      %s158 = sphi 0, %s156
      %s159 = sphi 0, %s158
      %s173 = sphi 0, %s159
      %s177 = sphi 0, %s177
      %s179 = sphi 0, %s177
      %s180 = sphi 0, %s179
      %s194 = sphi 0, %s180
      %s198 = sphi 0, %s198
      %s200 = sphi 0, %s198
      %s201 = sphi 0, %s200
      %s215 = sphi 0, %s201
      %s219 = sphi 0, %s219
      %s221 = sphi 0, %s219
      %s222 = sphi 0, %s221
      %s236 = sphi 0, %s222
      %s240 = sphi 0, %s240
      %s242 = sphi 0, %s240
      %s243 = sphi 0, %s242
      %s257 = sphi 0, %s243
      %s265 = sphi 0, %s267
      %s268 = sphi 0, %s265
      %s269 = sphi 0, %s268
      %s285 = sphi 0, %s269
    $region4: #{tpu_custom_call.1} parent=1 // loop_header_branch
      %31 = sbr.rel (%p29) target = $region8
    $region5: #{tpu_custom_call.1} parent=1 // loop_body
      %s33 = ssub.s32 %s28, 1
      %s34 = ssub.s32 %s28, 2
      %s41 = sadd.s32 1, %s36
      %p42 = scmp.ge.s32.totalorder %s41, 1
      %s43 = scalar_select %p42, 0, %s41
      %s44 = sadd.s32 1, %s35
      %s45 = scalar_select %p42, %s44, %s35
      %p46 = scmp.ge.s32.totalorder %s45, 2
      %s47 = scalar_select %p46, 0, %s45
      %s48 = ssub.s32 %s35, %s47
      %s49 = ssub.s32 %s36, %s43
      %s50 = sor.u32 %s48, %s49
      %p51 = scmp.eq.s32.totalorder %s50, 0
      %s53 = sadd.s32 %s52, 1
      %s54 = scalar_select %p51, %s52, %s53
      %p57 = pneg %p51
      %p58 = scmp.eq.s32.totalorder %s28, 1
      %p59 = por %p57, %p58
      %p60 = scmp.ne.s32.totalorder %s52, %s55
      %p61 = scmp.eq.s32.totalorder %s28, 0
      %p62 = por %p60, %p61
      %p63 = scmp.ne.s32.totalorder %s52, %s55
      %p64 = scmp.eq.s32.totalorder %s33, 1
      %p65 = por %p63, %p64
      %p66 = scmp.ne.s32.totalorder %s55, %s56
      %p67 = scmp.eq.s32.totalorder %s33, 0
      %p68 = por %p66, %p67
      %p69 = scmp.ne.s32.totalorder %s55, %s56
      %p70 = scmp.eq.s32.totalorder %s34, 1
      %p71 = por %p69, %p70
      %p73 = scmp.ne.s32.totalorder %s56, %s72
      %p74 = scmp.eq.s32.totalorder %s34, 0
      %p75 = por %p73, %p74
      %s76 = ssub.s32 %s35, %s47
      %p77 = scmp.eq.s32.totalorder %s76, 0
      %s79 = sadd.s32 %s78, 1
      %s80 = scalar_select %p77, %s78, %s79
      %p83 = pneg %p77
      %p84 = scmp.eq.s32.totalorder %s28, 1
      %p85 = por %p83, %p84
      %p86 = scmp.ne.s32.totalorder %s78, %s81
      %p87 = scmp.eq.s32.totalorder %s28, 0
      %p88 = por %p86, %p87
      %p89 = scmp.ne.s32.totalorder %s78, %s81
      %p90 = scmp.eq.s32.totalorder %s33, 1
      %p91 = por %p89, %p90
      %p92 = scmp.ne.s32.totalorder %s81, %s82
      %p93 = scmp.eq.s32.totalorder %s33, 0
      %p94 = por %p92, %p93
      %p95 = scmp.ne.s32.totalorder %s81, %s82
      %p96 = scmp.eq.s32.totalorder %s34, 1
      %p97 = por %p95, %p96
      %p99 = scmp.ne.s32.totalorder %s82, %s98
      %p100 = scmp.eq.s32.totalorder %s34, 0
      %p101 = por %p99, %p100
      %s102 = ssub.s32 %s35, %s47
      %p103 = scmp.eq.s32.totalorder %s102, 0
      %s105 = sadd.s32 %s104, 1
      %s106 = scalar_select %p103, %s104, %s105
      %p109 = pneg %p103
      %p110 = scmp.eq.s32.totalorder %s28, 1
      %p111 = por %p109, %p110
      %p112 = scmp.ne.s32.totalorder %s104, %s107
      %p113 = scmp.eq.s32.totalorder %s28, 0
      %p114 = por %p112, %p113
      %p115 = scmp.ne.s32.totalorder %s104, %s107
      %p116 = scmp.eq.s32.totalorder %s33, 1
      %p117 = por %p115, %p116
      %p118 = scmp.ne.s32.totalorder %s107, %s108
      %p119 = scmp.eq.s32.totalorder %s33, 0
      %p120 = por %p118, %p119
      %p121 = scmp.ne.s32.totalorder %s107, %s108
      %p122 = scmp.eq.s32.totalorder %s34, 1
      %p123 = por %p121, %p122
      %p125 = scmp.ne.s32.totalorder %s108, %s124
      %p126 = scmp.eq.s32.totalorder %s34, 0
      %p127 = por %p125, %p126
      %s128 = ssub.s32 %s35, %s47
      %s129 = ssub.s32 %s36, %s43
      %s130 = sor.u32 %s128, %s129
      %p131 = scmp.eq.s32.totalorder %s130, 0
      %s133 = sadd.s32 %s132, 1
      %s134 = scalar_select %p131, %s132, %s133
      %p137 = pneg %p131
      %p138 = scmp.eq.s32.totalorder %s28, 1
      %p139 = por %p137, %p138
      %p140 = scmp.ne.s32.totalorder %s132, %s135
      %p141 = scmp.eq.s32.totalorder %s28, 0
      %p142 = por %p140, %p141
      %p143 = scmp.ne.s32.totalorder %s132, %s135
      %p144 = scmp.eq.s32.totalorder %s33, 1
      %p145 = por %p143, %p144
      %p146 = scmp.ne.s32.totalorder %s135, %s136
      %p147 = scmp.eq.s32.totalorder %s33, 0
      %p148 = por %p146, %p147
      %p149 = scmp.ne.s32.totalorder %s135, %s136
      %p150 = scmp.eq.s32.totalorder %s34, 1
      %p151 = por %p149, %p150
      %p153 = scmp.ne.s32.totalorder %s136, %s152
      %p154 = scmp.eq.s32.totalorder %s34, 0
      %p155 = por %p153, %p154
      %s157 = sadd.s32 %s156, 1
      %p160 = scmp.eq.s32.totalorder %s28, 1
      %p161 = scmp.ne.s32.totalorder %s156, %s158
      %p162 = scmp.eq.s32.totalorder %s28, 0
      %p163 = por %p161, %p162
      %p164 = scmp.ne.s32.totalorder %s156, %s158
      %p165 = scmp.eq.s32.totalorder %s33, 1
      %p166 = por %p164, %p165
      %p167 = scmp.ne.s32.totalorder %s158, %s159
      %p168 = scmp.eq.s32.totalorder %s33, 0
      %p169 = por %p167, %p168
      %p170 = scmp.ne.s32.totalorder %s158, %s159
      %p171 = scmp.eq.s32.totalorder %s34, 1
      %p172 = por %p170, %p171
      %p174 = scmp.ne.s32.totalorder %s159, %s173
      %p175 = scmp.eq.s32.totalorder %s34, 0
      %p176 = por %p174, %p175
      %s178 = sadd.s32 %s177, 1
      %p181 = scmp.eq.s32.totalorder %s28, 1
      %p182 = scmp.ne.s32.totalorder %s177, %s179
      %p183 = scmp.eq.s32.totalorder %s28, 0
      %p184 = por %p182, %p183
      %p185 = scmp.ne.s32.totalorder %s177, %s179
      %p186 = scmp.eq.s32.totalorder %s33, 1
      %p187 = por %p185, %p186
      %p188 = scmp.ne.s32.totalorder %s179, %s180
      %p189 = scmp.eq.s32.totalorder %s33, 0
      %p190 = por %p188, %p189
      %p191 = scmp.ne.s32.totalorder %s179, %s180
      %p192 = scmp.eq.s32.totalorder %s34, 1
      %p193 = por %p191, %p192
      %p195 = scmp.ne.s32.totalorder %s180, %s194
      %p196 = scmp.eq.s32.totalorder %s34, 0
      %p197 = por %p195, %p196
      %s199 = sadd.s32 %s198, 1
      %p202 = scmp.eq.s32.totalorder %s28, 1
      %p203 = scmp.ne.s32.totalorder %s198, %s200
      %p204 = scmp.eq.s32.totalorder %s28, 0
      %p205 = por %p203, %p204
      %p206 = scmp.ne.s32.totalorder %s198, %s200
      %p207 = scmp.eq.s32.totalorder %s33, 1
      %p208 = por %p206, %p207
      %p209 = scmp.ne.s32.totalorder %s200, %s201
      %p210 = scmp.eq.s32.totalorder %s33, 0
      %p211 = por %p209, %p210
      %p212 = scmp.ne.s32.totalorder %s200, %s201
      %p213 = scmp.eq.s32.totalorder %s34, 1
      %p214 = por %p212, %p213
      %p216 = scmp.ne.s32.totalorder %s201, %s215
      %p217 = scmp.eq.s32.totalorder %s34, 0
      %p218 = por %p216, %p217
      %s220 = sadd.s32 %s219, 1
      %p223 = scmp.eq.s32.totalorder %s28, 1
      %p224 = scmp.ne.s32.totalorder %s219, %s221
      %p225 = scmp.eq.s32.totalorder %s28, 0
      %p226 = por %p224, %p225
      %p227 = scmp.ne.s32.totalorder %s219, %s221
      %p228 = scmp.eq.s32.totalorder %s33, 1
      %p229 = por %p227, %p228
      %p230 = scmp.ne.s32.totalorder %s221, %s222
      %p231 = scmp.eq.s32.totalorder %s33, 0
      %p232 = por %p230, %p231
      %p233 = scmp.ne.s32.totalorder %s221, %s222
      %p234 = scmp.eq.s32.totalorder %s34, 1
      %p235 = por %p233, %p234
      %p237 = scmp.ne.s32.totalorder %s222, %s236
      %p238 = scmp.eq.s32.totalorder %s34, 0
      %p239 = por %p237, %p238
      %s241 = sadd.s32 %s240, 1
      %p244 = scmp.eq.s32.totalorder %s28, 1
      %p245 = scmp.ne.s32.totalorder %s240, %s242
      %p246 = scmp.eq.s32.totalorder %s28, 0
      %p247 = por %p245, %p246
      %p248 = scmp.ne.s32.totalorder %s240, %s242
      %p249 = scmp.eq.s32.totalorder %s33, 1
      %p250 = por %p248, %p249
      %p251 = scmp.ne.s32.totalorder %s242, %s243
      %p252 = scmp.eq.s32.totalorder %s33, 0
      %p253 = por %p251, %p252
      %p254 = scmp.ne.s32.totalorder %s242, %s243
      %p255 = scmp.eq.s32.totalorder %s34, 1
      %p256 = por %p254, %p255
      %p258 = scmp.ne.s32.totalorder %s243, %s257
      %p259 = scmp.eq.s32.totalorder %s34, 0
      %p260 = por %p258, %p259
      %s261 = ssub.s32 %s35, %s47
      %s262 = ssub.s32 %s36, %s43
      %s263 = sor.u32 %s261, %s262
      %p264 = scmp.eq.s32.totalorder %s263, 0
      %s266 = sadd.s32 %s265, 1
      %s267 = scalar_select %p264, %s265, %s266
      %p270 = pneg %p264
      %p271 = scmp.eq.s32.totalorder %s28, 1
      %p272 = por %p270, %p271
      %p273 = scmp.ne.s32.totalorder %s265, %s268
      %p274 = scmp.eq.s32.totalorder %s28, 0
      %p275 = por %p273, %p274
      %p276 = scmp.ne.s32.totalorder %s265, %s268
      %p277 = scmp.eq.s32.totalorder %s33, 1
      %p278 = por %p276, %p277
      %p279 = scmp.ne.s32.totalorder %s268, %s269
      %p280 = scmp.eq.s32.totalorder %s33, 0
      %p281 = por %p279, %p280
      %p282 = scmp.ne.s32.totalorder %s268, %s269
      %p283 = scmp.eq.s32.totalorder %s34, 1
      %p284 = por %p282, %p283
      %p286 = scmp.ne.s32.totalorder %s269, %s285
      %p287 = scmp.eq.s32.totalorder %s34, 0
      %p288 = por %p286, %p287
      %p289 = scmp.le.s32.totalorder 1, %s28
      %p290 = scmp.lt.s32.totalorder %s28, 3
      %p291 = pnand %p289, %p290
      %p292 = pneg %p291
      // Predicated region
      $region9: #{tpu_custom_call.1} parent=5 // pred_check
        _
      $region10: #{tpu_custom_call.1} parent=5 // pred_check_branch
        %294 = sbr.rel (%p291) target = $region12
      $region11: #{tpu_custom_call.1} parent=5 // pred_region
        %s295 = ssub.s32 %s28, 1
        // Predicated region
        $region13: #{tpu_custom_call.1} parent=11 // pred_check
          %p296 = pneg %p169
        $region14: #{tpu_custom_call.1} parent=11 // pred_check_branch
          %298 = sbr.rel (%p296) target = $region16
        $region15: #{tpu_custom_call.1} parent=11 // pred_region
          %300 = vsyncadd [#allocation9], 0
          %s301 = sshll.u32 %s4, 4
          %s302 = int_to_ptr.hbm [resolvable:$true] %s301
          %s303 = sshll.u32 [#allocation10], 4
          %s304 = int_to_ptr.vmem [resolvable:$true] %s303
          %309 = dma.hbm_to_vmem [thread:$0]  %s302, 256, %s304, [#allocation9], 64, 64, 4
        $region16: #{tpu_custom_call.1} parent=11 // pred_fallthru
          _
        // Predicated region
        $region17: #{tpu_custom_call.1} parent=11 // pred_check
          %p310 = pneg %p190
        $region18: #{tpu_custom_call.1} parent=11 // pred_check_branch
          %312 = sbr.rel (%p310) target = $region20
        $region19: #{tpu_custom_call.1} parent=11 // pred_region
          %314 = vsyncadd [#allocation12], 0
          %s315 = sshll.u32 %s5, 4
          %s316 = int_to_ptr.hbm [resolvable:$true] %s315
          %s317 = sshll.u32 [#allocation11], 4
          %s318 = int_to_ptr.vmem [resolvable:$true] %s317
          %323 = dma.hbm_to_vmem [thread:$0]  %s316, 256, %s318, [#allocation12], 64, 64, 4
        $region20: #{tpu_custom_call.1} parent=11 // pred_fallthru
          _
        // Predicated region
        $region21: #{tpu_custom_call.1} parent=11 // pred_check
          %p324 = pneg %p211
        $region22: #{tpu_custom_call.1} parent=11 // pred_check_branch
          %326 = sbr.rel (%p324) target = $region24
        $region23: #{tpu_custom_call.1} parent=11 // pred_region
          _
        $region24: #{tpu_custom_call.1} parent=11 // pred_fallthru
          _
        // Predicated region
        $region25: #{tpu_custom_call.1} parent=11 // pred_check
          %p327 = pneg %p232
        $region26: #{tpu_custom_call.1} parent=11 // pred_check_branch
          %329 = sbr.rel (%p327) target = $region28
        $region27: #{tpu_custom_call.1} parent=11 // pred_region
          _
        $region28: #{tpu_custom_call.1} parent=11 // pred_fallthru
          _
        // Predicated region
        $region29: #{tpu_custom_call.1} parent=11 // pred_check
          %p330 = pneg %p253
        $region30: #{tpu_custom_call.1} parent=11 // pred_check_branch
          %332 = sbr.rel (%p330) target = $region32
        $region31: #{tpu_custom_call.1} parent=11 // pred_region
          _
        $region32: #{tpu_custom_call.1} parent=11 // pred_fallthru
          _
      $region12: #{tpu_custom_call.1} parent=5 // pred_fallthru
        _
      %p333 = scmp.lt.s32.totalorder %s28, 2
      // Predicated region
      $region33: #{tpu_custom_call.1} parent=5 // pred_check
        %p334 = pneg %p333
      $region34: #{tpu_custom_call.1} parent=5 // pred_check_branch
        %336 = sbr.rel (%p334) target = $region36
      $region35: #{tpu_custom_call.1} parent=5 // pred_region
        // Predicated region
        $region37: #{tpu_custom_call.1} parent=35 // pred_check
          %p337 = pneg %p62
        $region38: #{tpu_custom_call.1} parent=35 // pred_check_branch
          %339 = sbr.rel (%p337) target = $region40
        $region39: #{tpu_custom_call.1} parent=35 // pred_region
          %s340 = sand.u32 %s52, 1
          %s341 = scalar_lea.sflag [#allocation3], %s340
          %s342 = sand.u32 %s52, 1
          %s343 = smul.addr %s342, 8
          %s344 = scalar_lea.vmem [#allocation2], %s343
          %346 = vsyncadd %s341, 0
          %s347 = sadd.s32 %s36, %s35
          %s348 = smul.addr %s347, 8
          %s349 = scalar_lea.hbm %s0, %s348
          %s351 = sshll.u32 %s349, 4
          %s352 = int_to_ptr.hbm [resolvable:$true] %s351
          %s353 = sshll.u32 %s344, 4
          %s354 = int_to_ptr.vmem [resolvable:$true] %s353
          %356 = dma.hbm_to_vmem [thread:$0]  %s352, 128, %s354, %s341
        $region40: #{tpu_custom_call.1} parent=35 // pred_fallthru
          _
        // Predicated region
        $region41: #{tpu_custom_call.1} parent=35 // pred_check
          %p357 = pneg %p88
        $region42: #{tpu_custom_call.1} parent=35 // pred_check_branch
          %359 = sbr.rel (%p357) target = $region44
        $region43: #{tpu_custom_call.1} parent=35 // pred_region
          %s360 = sand.u32 %s28, 1
          %s361 = scalar_lea.sflag [#allocation6], %s360
          %s362 = sand.u32 %s78, 1
          %s363 = smul.addr %s362, 16
          %s364 = scalar_lea.vmem [#allocation5], %s363
          %366 = vsyncadd %s361, 0
          %s367 = smul.addr %s35, 4
          %s368 = smul.addr %s367, 4
          %s369 = scalar_lea.hbm %s1, %s368
          %s370 = sshll.u32 %s369, 4
          %s371 = int_to_ptr.hbm [resolvable:$true] %s370
          %s372 = sshll.u32 %s364, 4
          %s373 = int_to_ptr.vmem [resolvable:$true] %s372
          %378 = dma.hbm_to_vmem [thread:$0]  %s371, 256, %s373, %s361, 64, 64, 4
        $region44: #{tpu_custom_call.1} parent=35 // pred_fallthru
          _
        // Predicated region
        $region45: #{tpu_custom_call.1} parent=35 // pred_check
          %p379 = pneg %p114
        $region46: #{tpu_custom_call.1} parent=35 // pred_check_branch
          %381 = sbr.rel (%p379) target = $region48
        $region47: #{tpu_custom_call.1} parent=35 // pred_region
          %s382 = sand.u32 %s28, 1
          %s383 = scalar_lea.sflag [#allocation6], %s382
          %s384 = sand.u32 %s104, 1
          %s385 = smul.addr %s384, 16
          %s386 = scalar_lea.vmem [#allocation7], %s385
          %388 = vsyncadd %s383, 0
          %s389 = smul.addr %s35, 4
          %s390 = smul.addr %s389, 4
          %s391 = scalar_lea.hbm %s2, %s390
          %s392 = sshll.u32 %s391, 4
          %s393 = int_to_ptr.hbm [resolvable:$true] %s392
          %s394 = sshll.u32 %s386, 4
          %s395 = int_to_ptr.vmem [resolvable:$true] %s394
          %400 = dma.hbm_to_vmem [thread:$0]  %s393, 256, %s395, %s383, 64, 64, 4
        $region48: #{tpu_custom_call.1} parent=35 // pred_fallthru
          _
        // Predicated region
        $region49: #{tpu_custom_call.1} parent=35 // pred_check
          %p401 = pneg %p142
        $region50: #{tpu_custom_call.1} parent=35 // pred_check_branch
          %403 = sbr.rel (%p401) target = $region52
        $region51: #{tpu_custom_call.1} parent=35 // pred_region
          %s404 = sand.u32 %s28, 1
          %s405 = scalar_lea.sflag [#allocation9], %s404
          %s406 = sand.u32 %s132, 1
          %s407 = smul.addr %s406, 4
          %s408 = scalar_lea.vmem [#allocation8], %s407
          %410 = vsyncadd %s405, 0
          %s411 = sadd.s32 %s36, %s35
          %s412 = smul.addr %s411, 4
          %s413 = scalar_lea.hbm %s3, %s412
          %s415 = sshll.u32 %s413, 4
          %s416 = int_to_ptr.hbm [resolvable:$true] %s415
          %s417 = sshll.u32 %s408, 4
          %s418 = int_to_ptr.vmem [resolvable:$true] %s417
          %420 = dma.hbm_to_vmem [thread:$0]  %s416, 64, %s418, %s405
        $region52: #{tpu_custom_call.1} parent=35 // pred_fallthru
          _
      $region36: #{tpu_custom_call.1} parent=5 // pred_fallthru
        _
      %p421 = scmp.le.s32.totalorder 1, %s28
      %p422 = scmp.lt.s32.totalorder %s28, 3
      %p423 = pnand %p421, %p422
      %p424 = pneg %p423
      // Predicated region
      $region53: #{tpu_custom_call.1} parent=5 // pred_check
        _
      $region54: #{tpu_custom_call.1} parent=5 // pred_check_branch
        %426 = sbr.rel (%p423) target = $region56
      $region55: #{tpu_custom_call.1} parent=5 // pred_region
        %s427 = ssub.s32 %s28, 1
        %s428 = sand.u32 %s55, 1
        %s429 = scalar_lea.sflag [#allocation3], %s428
        %s430 = sand.u32 %s55, 1
        %s431 = smul.addr %s430, 8
        %s432 = scalar_lea.vmem [#allocation2], %s431
        // Predicated region
        $region57: #{tpu_custom_call.1} parent=55 // pred_check
          %p433 = pneg %p68
        $region58: #{tpu_custom_call.1} parent=55 // pred_check_branch
          %435 = sbr.rel (%p433) target = $region60
        $region59: #{tpu_custom_call.1} parent=55 // pred_region
          %437 = dma.done %s429, 128
        $region60: #{tpu_custom_call.1} parent=55 // pred_fallthru
          _
        %s438 = sand.u32 %s33, 1
        %s439 = scalar_lea.sflag [#allocation6], %s438
        %s440 = sand.u32 %s81, 1
        %s441 = smul.addr %s440, 16
        %s442 = scalar_lea.vmem [#allocation5], %s441
        // Predicated region
        $region61: #{tpu_custom_call.1} parent=55 // pred_check
          %p443 = pneg %p94
        $region62: #{tpu_custom_call.1} parent=55 // pred_check_branch
          %445 = sbr.rel (%p443) target = $region64
        $region63: #{tpu_custom_call.1} parent=55 // pred_region
          %447 = dma.done %s439, 256
        $region64: #{tpu_custom_call.1} parent=55 // pred_fallthru
          _
        %s448 = sand.u32 %s33, 1
        %s449 = scalar_lea.sflag [#allocation6], %s448
        %s450 = sand.u32 %s107, 1
        %s451 = smul.addr %s450, 16
        %s452 = scalar_lea.vmem [#allocation7], %s451
        // Predicated region
        $region65: #{tpu_custom_call.1} parent=55 // pred_check
          %p453 = pneg %p120
        $region66: #{tpu_custom_call.1} parent=55 // pred_check_branch
          %455 = sbr.rel (%p453) target = $region68
        $region67: #{tpu_custom_call.1} parent=55 // pred_region
          %457 = dma.done %s449, 256
        $region68: #{tpu_custom_call.1} parent=55 // pred_fallthru
          _
        %s458 = sand.u32 %s33, 1
        %s459 = scalar_lea.sflag [#allocation9], %s458
        %s460 = sand.u32 %s135, 1
        %s461 = smul.addr %s460, 4
        %s462 = scalar_lea.vmem [#allocation8], %s461
        // Predicated region
        $region69: #{tpu_custom_call.1} parent=55 // pred_check
          %p463 = pneg %p148
        $region70: #{tpu_custom_call.1} parent=55 // pred_check_branch
          %465 = sbr.rel (%p463) target = $region72
        $region71: #{tpu_custom_call.1} parent=55 // pred_region
          %467 = dma.done %s459, 64
        $region72: #{tpu_custom_call.1} parent=55 // pred_fallthru
          _
        // Predicated region
        $region73: #{tpu_custom_call.1} parent=55 // pred_check
          %p468 = pneg %p169
        $region74: #{tpu_custom_call.1} parent=55 // pred_check_branch
          %470 = sbr.rel (%p468) target = $region76
        $region75: #{tpu_custom_call.1} parent=55 // pred_region
          %472 = dma.done [#allocation9], 256
        $region76: #{tpu_custom_call.1} parent=55 // pred_fallthru
          _
        // Predicated region
        $region77: #{tpu_custom_call.1} parent=55 // pred_check
          %p473 = pneg %p190
        $region78: #{tpu_custom_call.1} parent=55 // pred_check_branch
          %475 = sbr.rel (%p473) target = $region80
        $region79: #{tpu_custom_call.1} parent=55 // pred_region
          %477 = dma.done [#allocation12], 256
        $region80: #{tpu_custom_call.1} parent=55 // pred_fallthru
          _
        %s478 = sand.u32 %s55, 1
        %s479 = scalar_lea.sflag [#allocation3], %s478
        %s480 = sand.u32 %s55, 1
        %s481 = smul.addr %s480, 8
        %s482 = scalar_lea.vmem [#allocation2], %s481
        %p483 = pneg %p68
        %p484 = pneg %p65
        %s485 = sand.u32 %s33, 1
        %s486 = scalar_lea.sflag [#allocation6], %s485
        %s487 = sand.u32 %s81, 1
        %s488 = smul.addr %s487, 16
        %s489 = scalar_lea.vmem [#allocation5], %s488
        %p490 = pneg %p94
        %p491 = pneg %p91
        %s492 = sand.u32 %s33, 1
        %s493 = scalar_lea.sflag [#allocation6], %s492
        %s494 = sand.u32 %s107, 1
        %s495 = smul.addr %s494, 16
        %s496 = scalar_lea.vmem [#allocation7], %s495
        %p497 = pneg %p120
        %p498 = pneg %p117
        %s499 = sand.u32 %s33, 1
        %s500 = scalar_lea.sflag [#allocation9], %s499
        %s501 = sand.u32 %s135, 1
        %s502 = smul.addr %s501, 4
        %s503 = scalar_lea.vmem [#allocation8], %s502
        %p504 = pneg %p148
        %p505 = pneg %p145
        %p506 = pneg %p169
        %p507 = pneg %p166
        %p508 = pneg %p190
        %p509 = pneg %p187
        %p510 = pneg %p211
        %p511 = pneg %p208
        %p512 = pneg %p232
        %p513 = pneg %p229
        %p514 = pneg %p253
        %p515 = pneg %p250
        %p516 = pneg %p281
        %p517 = pneg %p278
        %s518 = sand.u32 %s268, 1
        %s519 = scalar_lea.sflag [#allocation4], %s518
        %s520 = sand.u32 %s268, 1
        %s521 = smul.addr %s520, 8
        %s522 = scalar_lea.vmem [#allocation13], %s521
        %v524 = vld [vmem:[%s432] sm:$0xff]
        %v525 = vpack.c.bf16 %v524, %v524
        %v526 = vld [vmem:[#allocation10] sm:$0xf]
        %v527 = vld [vmem:[#allocation10 + $0x4] sm:$0xf]
        %v528 = vld [vmem:[#allocation10 + $0x8] sm:$0xf]
        %v529 = vld [vmem:[#allocation10 + $0xc] sm:$0xf]
        %v534 = vunpack.c.l.b16 %v526
        %v535 = vunpack.c.l.b16 %v527
        %v536 = vunpack.c.l.b16 %v528
        %v537 = vunpack.c.l.b16 %v529
        %v538 = vpack.c.b16 %v535, %v534
        %v539 = vpack.c.b16 %v537, %v536
        %vm542 = vcmask 261120
        %v544 = vsel %vm542, %v525, 0
        %546 = vmatpush.bf16.msra.mxu0 0
        %547 = vmatpush.bf16.msra.mxu0 0
        %548 = vmatpush.bf16.msra.mxu0 0
        %549 = vmatpush.bf16.msra.mxu0 0
        %550 = vmatpush.bf16.msra.mxu0 0
        %551 = vmatpush.bf16.msra.mxu0 0
        %552 = vmatpush.bf16.msra.mxu0 %v539
        %553 = vmatpush.bf16.msra.mxu0 %v538
        %554 = vmatmul.bf16.gmra.mxu0 %v544
        %v555 = vpop.f32.mrf.mxu0
        %v556 = vadd.f32 0.0, %v555
        %v557 = vpop.f32.mrf.mxu0
        %558 = vdwg.mxu0
        %560 = vrot.lane.b32.xlu0 %v556, 120
        %v561 = vpop.permute.xlu0 %560
        %563 = vrot.lane.b32.xlu0 %v556, 112
        %v564 = vpop.permute.xlu0 %563
        %566 = vrot.lane.b32.xlu0 %v556, 104
        %v567 = vpop.permute.xlu0 %566
        %v569 = vrot.slane %v564, 4
        %vm570 = vcmask 1047556
        %v571 = vsel %vm570, %v569, %v556
        %v572 = vrot.slane %v556, 4
        %v573 = vsel %vm570, %v564, %v572
        %v575 = vunpack.c.l.s4 1983009808
        %v576 = vunpack.c.0.s8 %v575
        %v577 = vperm.slane %v571, %v576
        %v579 = vunpack.c.l.s4 1983009808
        %v580 = vunpack.c.0.s8 %v579
        %v581 = vperm.slane %v573, %v580
        %v582 = vrot.slane %v567, 4
        %v583 = vsel %vm570, %v582, %v561
        %v584 = vrot.slane %v561, 4
        %v585 = vsel %vm570, %v567, %v584
        %v587 = vunpack.c.l.s4 1983009808
        %v588 = vunpack.c.0.s8 %v587
        %v589 = vperm.slane %v583, %v588
        %v591 = vunpack.c.l.s4 1983009808
        %v592 = vunpack.c.0.s8 %v591
        %v593 = vperm.slane %v585, %v592
        %v594 = vrot.slane %v589, 4
        %v595 = vsel %vm570, %v594, %v577
        %v596 = vrot.slane %v577, 4
        %v597 = vsel %vm570, %v589, %v596
        %v599 = vunpack.c.l.s4 1934713408
        %v600 = vunpack.c.0.s8 %v599
        %v601 = vperm.slane %v595, %v600
        %v603 = vunpack.c.l.s4 1934713408
        %v604 = vunpack.c.0.s8 %v603
        %v605 = vperm.slane %v597, %v604
        %v606 = vrot.slane %v593, 4
        %v607 = vsel %vm570, %v606, %v581
        %v608 = vrot.slane %v581, 4
        %v609 = vsel %vm570, %v593, %v608
        %v611 = vunpack.c.l.s4 1934713408
        %v612 = vunpack.c.0.s8 %v611
        %v613 = vperm.slane %v607, %v612
        %v615 = vunpack.c.l.s4 1934713408
        %v616 = vunpack.c.0.s8 %v615
        %v617 = vperm.slane %v609, %v616
        %v618 = vrot.slane %v601, 4
        %v619 = vsel %vm570, 0.0, %v618
        %v620 = vrot.slane %v605, 4
        %v621 = vsel %vm570, 0.0, %v620
        %v622 = vrot.slane %v613, 4
        %v623 = vsel %vm570, 0.0, %v622
        %v624 = vrot.slane %v617, 4
        %v625 = vsel %vm570, 0.0, %v624
        %v626 = vsel %vm570, %v620, %v601
        %v628 = vunpack.c.l.s4 1983009808
        %v629 = vunpack.c.0.s8 %v628
        %v630 = vperm.slane %v626, %v629
        %v631 = vrot.slane %v621, 4
        %v632 = vsel %vm570, %v631, %v619
        %v634 = vunpack.c.l.s4 1983009808
        %v635 = vunpack.c.0.s8 %v634
        %v636 = vperm.slane %v632, %v635
        %v637 = vsel %vm570, %v624, %v613
        %v639 = vunpack.c.l.s4 1983009808
        %v640 = vunpack.c.0.s8 %v639
        %v641 = vperm.slane %v637, %v640
        %v642 = vrot.slane %v625, 4
        %v643 = vsel %vm570, %v642, %v623
        %v645 = vunpack.c.l.s4 1983009808
        %v646 = vunpack.c.0.s8 %v645
        %v647 = vperm.slane %v643, %v646
        %v648 = vrot.slane %v636, 4
        %v649 = vsel %vm570, %v648, %v630
        %v650 = vrot.slane %v630, 4
        %v651 = vsel %vm570, %v636, %v650
        %v653 = vunpack.c.l.s4 1934713408
        %v654 = vunpack.c.0.s8 %v653
        %v655 = vperm.slane %v649, %v654
        %v657 = vunpack.c.l.s4 1934713408
        %v658 = vunpack.c.0.s8 %v657
        %v659 = vperm.slane %v651, %v658
        %v660 = vrot.slane %v647, 4
        %v661 = vsel %vm570, %v660, %v641
        %v662 = vrot.slane %v641, 4
        %v663 = vsel %vm570, %v647, %v662
        %v665 = vunpack.c.l.s4 1934713408
        %v666 = vunpack.c.0.s8 %v665
        %v667 = vperm.slane %v661, %v666
        %v669 = vunpack.c.l.s4 1934713408
        %v670 = vunpack.c.0.s8 %v669
        %v671 = vperm.slane %v663, %v670
        %v672 = vrot.slane %v667, 4
        %v673 = vsel %vm570, %v672, %v655
        %v674 = vrot.slane %v655, 4
        %v675 = vsel %vm570, %v667, %v674
        %v676 = vrot.slane %v671, 4
        %v677 = vsel %vm570, %v676, %v659
        %v678 = vrot.slane %v659, 4
        %v679 = vsel %vm570, %v671, %v678
        %v680 = vpack.c.bf16 %v673, %v673
        %v681 = vpack.c.bf16 %v675, %v675
        %v682 = vpack.c.bf16 %v677, %v677
        %v683 = vpack.c.bf16 %v679, %v679
        %v684 = vld [vmem:[%s442] sm:$0xf]
        %v685 = vld [vmem:[%s442 + $0x4] sm:$0xf]
        %v686 = vld [vmem:[%s442 + $0x8] sm:$0xf]
        %v687 = vld [vmem:[%s442 + $0xc] sm:$0xf]
        %v688 = vld [vmem:[%s462] sm:$0xf]
        %v689 = vunpack.c.l.bf16 %v688
        %vm690 = vcmask 64512
        %v692 = vsel %vm690, %v680, 0
        %v695 = vsel %vm690, %v684, 0
        %697 = vmatpush.bf16.xpose.msra.mxu0 0
        %698 = vmatpush.bf16.xpose.msra.mxu0 0
        %699 = vmatpush.bf16.xpose.msra.mxu0 0
        %700 = vmatpush.bf16.xpose.msra.mxu0 0
        %701 = vmatpush.bf16.xpose.msra.mxu0 0
        %702 = vmatpush.bf16.xpose.msra.mxu0 0
        %703 = vmatpush.bf16.xpose.msra.mxu0 0
        %704 = vmatpush.bf16.xpose.msra.mxu0 %v695
        %705 = vmatmul.bf16.gmra.mxu0 %v692
        %v706 = vpop.f32.mrf.mxu0
        %v707 = vadd.f32 %v689, %v706
        %v708 = vpop.f32.mrf.mxu0
        %709 = vdwg.mxu0
        %v711 = vsel %vm690, %v681, 0
        %v714 = vsel %vm690, %v685, 0
        %716 = vmatpush.bf16.xpose.msra.mxu0 0
        %717 = vmatpush.bf16.xpose.msra.mxu0 0
        %718 = vmatpush.bf16.xpose.msra.mxu0 0
        %719 = vmatpush.bf16.xpose.msra.mxu0 0
        %720 = vmatpush.bf16.xpose.msra.mxu0 0
        %721 = vmatpush.bf16.xpose.msra.mxu0 0
        %722 = vmatpush.bf16.xpose.msra.mxu0 0
        %723 = vmatpush.bf16.xpose.msra.mxu0 %v714
        %724 = vmatmul.bf16.gmra.mxu0 %v711
        %v725 = vpop.f32.mrf.mxu0
        %v726 = vadd.f32 %v689, %v725
        %v727 = vpop.f32.mrf.mxu0
        %728 = vdwg.mxu0
        %v730 = vsel %vm690, %v682, 0
        %v733 = vsel %vm690, %v686, 0
        %735 = vmatpush.bf16.xpose.msra.mxu0 0
        %736 = vmatpush.bf16.xpose.msra.mxu0 0
        %737 = vmatpush.bf16.xpose.msra.mxu0 0
        %738 = vmatpush.bf16.xpose.msra.mxu0 0
        %739 = vmatpush.bf16.xpose.msra.mxu0 0
        %740 = vmatpush.bf16.xpose.msra.mxu0 0
        %741 = vmatpush.bf16.xpose.msra.mxu0 0
        %742 = vmatpush.bf16.xpose.msra.mxu0 %v733
        %743 = vmatmul.bf16.gmra.mxu0 %v730
        %v744 = vpop.f32.mrf.mxu0
        %v745 = vadd.f32 %v689, %v744
        %v746 = vpop.f32.mrf.mxu0
        %747 = vdwg.mxu0
        %v749 = vsel %vm690, %v683, 0
        %v752 = vsel %vm690, %v687, 0
        %754 = vmatpush.bf16.xpose.msra.mxu0 0
        %755 = vmatpush.bf16.xpose.msra.mxu0 0
        %756 = vmatpush.bf16.xpose.msra.mxu0 0
        %757 = vmatpush.bf16.xpose.msra.mxu0 0
        %758 = vmatpush.bf16.xpose.msra.mxu0 0
        %759 = vmatpush.bf16.xpose.msra.mxu0 0
        %760 = vmatpush.bf16.xpose.msra.mxu0 0
        %761 = vmatpush.bf16.xpose.msra.mxu0 %v752
        %762 = vmatmul.bf16.gmra.mxu0 %v749
        %v763 = vpop.f32.mrf.mxu0
        %v764 = vadd.f32 %v689, %v763
        %v765 = vpop.f32.mrf.mxu0
        %766 = vdwg.mxu0
        %v767 = vsel %vm690, %v707, -inf
        %768 = vmax.xlane.f32.xlu0 %v767
        %v769 = vpop.xlane.xlu0 %768
        %v770 = vsel %vm690, %v726, -inf
        %771 = vmax.xlane.f32.xlu0 %v770
        %v772 = vpop.xlane.xlu0 %771
        %v773 = vsel %vm690, %v745, -inf
        %774 = vmax.xlane.f32.xlu0 %v773
        %v775 = vpop.xlane.xlu0 %774
        %v776 = vsel %vm690, %v764, -inf
        %777 = vmax.xlane.f32.xlu0 %v776
        %v778 = vpop.xlane.xlu0 %777
        %v779 = vsub.f32 %v707, %v769
        %v780 = vsub.f32 %v726, %v772
        %v781 = vsub.f32 %v745, %v775
        %v782 = vsub.f32 %v764, %v778
        %v783 = vmul.f32 %v779, 1.442695
        %v784 = vpow.pop %v783
        %v785 = vmul.f32 %v780, 1.442695
        %v786 = vpow.pop %v785
        %v787 = vmul.f32 %v781, 1.442695
        %v788 = vpow.pop %v787
        %v789 = vmul.f32 %v782, 1.442695
        %v790 = vpow.pop %v789
        %v791 = vpack.c.bf16 %v784, %v784
        %v792 = vpack.c.bf16 %v786, %v786
        %v793 = vpack.c.bf16 %v788, %v788
        %v794 = vpack.c.bf16 %v790, %v790
        %v795 = vunpack.c.l.bf16 %v791
        %v796 = vunpack.c.l.bf16 %v792
        %v797 = vunpack.c.l.bf16 %v793
        %v798 = vunpack.c.l.bf16 %v794
        %v799 = vsel %vm690, %v795, 0.0
        %800 = vadd.xlane.f32.xlu0 %v799
        %v801 = vpop.xlane.xlu0 %800
        %v802 = vsel %vm690, %v796, 0.0
        %803 = vadd.xlane.f32.xlu0 %v802
        %v804 = vpop.xlane.xlu0 %803
        %v805 = vsel %vm690, %v797, 0.0
        %806 = vadd.xlane.f32.xlu0 %v805
        %v807 = vpop.xlane.xlu0 %806
        %v808 = vsel %vm690, %v798, 0.0
        %809 = vadd.xlane.f32.xlu0 %v808
        %v810 = vpop.xlane.xlu0 %809
        %v811 = vld [vmem:[%s452] sm:$0xf]
        %v812 = vld [vmem:[%s452 + $0x4] sm:$0xf]
        %v813 = vld [vmem:[%s452 + $0x8] sm:$0xf]
        %v814 = vld [vmem:[%s452 + $0xc] sm:$0xf]
        %v816 = vsel %vm690, %v791, 0
        %vm818 = vcmask 1043456
        %v820 = vsel %vm818, %v811, 0
        %822 = vmatpush.bf16.msra.mxu0 0
        %823 = vmatpush.bf16.msra.mxu0 0
        %824 = vmatpush.bf16.msra.mxu0 0
        %825 = vmatpush.bf16.msra.mxu0 0
        %826 = vmatpush.bf16.msra.mxu0 0
        %827 = vmatpush.bf16.msra.mxu0 0
        %828 = vmatpush.bf16.msra.mxu0 0
        %829 = vmatpush.bf16.msra.mxu0 %v820
        %830 = vmatmul.bf16.gmra.mxu0 %v816
        %v831 = vpop.f32.mrf.mxu0
        %v832 = vadd.f32 0.0, %v831
        %v833 = vpop.f32.mrf.mxu0
        %834 = vdwg.mxu0
        %v836 = vsel %vm690, %v792, 0
        %v839 = vsel %vm818, %v812, 0
        %841 = vmatpush.bf16.msra.mxu0 0
        %842 = vmatpush.bf16.msra.mxu0 0
        %843 = vmatpush.bf16.msra.mxu0 0
        %844 = vmatpush.bf16.msra.mxu0 0
        %845 = vmatpush.bf16.msra.mxu0 0
        %846 = vmatpush.bf16.msra.mxu0 0
        %847 = vmatpush.bf16.msra.mxu0 0
        %848 = vmatpush.bf16.msra.mxu0 %v839
        %849 = vmatmul.bf16.gmra.mxu0 %v836
        %v850 = vpop.f32.mrf.mxu0
        %v851 = vadd.f32 0.0, %v850
        %v852 = vpop.f32.mrf.mxu0
        %853 = vdwg.mxu0
        %v855 = vsel %vm690, %v793, 0
        %v858 = vsel %vm818, %v813, 0
        %860 = vmatpush.bf16.msra.mxu0 0
        %861 = vmatpush.bf16.msra.mxu0 0
        %862 = vmatpush.bf16.msra.mxu0 0
        %863 = vmatpush.bf16.msra.mxu0 0
        %864 = vmatpush.bf16.msra.mxu0 0
        %865 = vmatpush.bf16.msra.mxu0 0
        %866 = vmatpush.bf16.msra.mxu0 0
        %867 = vmatpush.bf16.msra.mxu0 %v858
        %868 = vmatmul.bf16.gmra.mxu0 %v855
        %v869 = vpop.f32.mrf.mxu0
        %v870 = vadd.f32 0.0, %v869
        %v871 = vpop.f32.mrf.mxu0
        %872 = vdwg.mxu0
        %v874 = vsel %vm690, %v794, 0
        %v877 = vsel %vm818, %v814, 0
        %879 = vmatpush.bf16.msra.mxu0 0
        %880 = vmatpush.bf16.msra.mxu0 0
        %881 = vmatpush.bf16.msra.mxu0 0
        %882 = vmatpush.bf16.msra.mxu0 0
        %883 = vmatpush.bf16.msra.mxu0 0
        %884 = vmatpush.bf16.msra.mxu0 0
        %885 = vmatpush.bf16.msra.mxu0 0
        %886 = vmatpush.bf16.msra.mxu0 %v877
        %887 = vmatmul.bf16.gmra.mxu0 %v874
        %v888 = vpop.f32.mrf.mxu0
        %v889 = vadd.f32 0.0, %v888
        %v890 = vpop.f32.mrf.mxu0
        %891 = vdwg.mxu0
        %v892 = vrcp.pop %v801
        %v893 = vrcp.pop %v804
        %v894 = vrcp.pop %v807
        %v895 = vrcp.pop %v810
        %v896 = vmul.f32 %v832, %v892
        %v897 = vmul.f32 %v851, %v893
        %v898 = vmul.f32 %v870, %v894
        %v899 = vmul.f32 %v889, %v895
        %v900 = vpack.c.bf16 %v896, %v896
        %v901 = vpack.c.bf16 %v897, %v897
        %v902 = vpack.c.bf16 %v898, %v898
        %v903 = vpack.c.bf16 %v899, %v899
        %v904 = vld [vmem:[#allocation11] sm:$0xf]
        %v905 = vld [vmem:[#allocation11 + $0x4] sm:$0xf]
        %v906 = vld [vmem:[#allocation11 + $0x8] sm:$0xf]
        %v907 = vld [vmem:[#allocation11 + $0xc] sm:$0xf]
        %v909 = vsel %vm690, %v900, 0
        %v912 = vsel %vm818, %v904, 0
        %914 = vmatpush.bf16.msra.mxu0 0
        %915 = vmatpush.bf16.msra.mxu0 0
        %916 = vmatpush.bf16.msra.mxu0 0
        %917 = vmatpush.bf16.msra.mxu0 0
        %918 = vmatpush.bf16.msra.mxu0 0
        %919 = vmatpush.bf16.msra.mxu0 0
        %920 = vmatpush.bf16.msra.mxu0 0
        %921 = vmatpush.bf16.msra.mxu0 %v912
        %922 = vmatmul.bf16.gmra.mxu0 %v909
        %v923 = vpop.f32.mrf.mxu0
        %v924 = vadd.f32 0.0, %v923
        %v925 = vpop.f32.mrf.mxu0
        %926 = vdwg.mxu0
        %v928 = vsel %vm690, %v901, 0
        %v931 = vsel %vm818, %v905, 0
        %933 = vmatpush.bf16.msra.mxu0 0
        %934 = vmatpush.bf16.msra.mxu0 0
        %935 = vmatpush.bf16.msra.mxu0 0
        %936 = vmatpush.bf16.msra.mxu0 0
        %937 = vmatpush.bf16.msra.mxu0 0
        %938 = vmatpush.bf16.msra.mxu0 0
        %939 = vmatpush.bf16.msra.mxu0 0
        %940 = vmatpush.bf16.msra.mxu0 %v931
        %941 = vmatmul.bf16.gmra.mxu0 %v928
        %v942 = vpop.f32.mrf.mxu0
        %v943 = vadd.f32 0.0, %v942
        %v944 = vpop.f32.mrf.mxu0
        %945 = vdwg.mxu0
        %v947 = vsel %vm690, %v902, 0
        %v950 = vsel %vm818, %v906, 0
        %952 = vmatpush.bf16.msra.mxu0 0
        %953 = vmatpush.bf16.msra.mxu0 0
        %954 = vmatpush.bf16.msra.mxu0 0
        %955 = vmatpush.bf16.msra.mxu0 0
        %956 = vmatpush.bf16.msra.mxu0 0
        %957 = vmatpush.bf16.msra.mxu0 0
        %958 = vmatpush.bf16.msra.mxu0 0
        %959 = vmatpush.bf16.msra.mxu0 %v950
        %960 = vmatmul.bf16.gmra.mxu0 %v947
        %v961 = vpop.f32.mrf.mxu0
        %v962 = vadd.f32 0.0, %v961
        %v963 = vpop.f32.mrf.mxu0
        %964 = vdwg.mxu0
        %v966 = vsel %vm690, %v903, 0
        %v969 = vsel %vm818, %v907, 0
        %971 = vmatpush.bf16.msra.mxu0 0
        %972 = vmatpush.bf16.msra.mxu0 0
        %973 = vmatpush.bf16.msra.mxu0 0
        %974 = vmatpush.bf16.msra.mxu0 0
        %975 = vmatpush.bf16.msra.mxu0 0
        %976 = vmatpush.bf16.msra.mxu0 0
        %977 = vmatpush.bf16.msra.mxu0 0
        %978 = vmatpush.bf16.msra.mxu0 %v969
        %979 = vmatmul.bf16.gmra.mxu0 %v966
        %v980 = vpop.f32.mrf.mxu0
        %v981 = vadd.f32 0.0, %v980
        %v982 = vpop.f32.mrf.mxu0
        %983 = vdwg.mxu0
        %v984 = vsel %vm542, %v924, 0.0
        %v985 = vsel %vm542, %v943, 0.0
        %v986 = vadd.f32 %v984, %v985
        %v987 = vsel %vm542, %v962, 0.0
        %v988 = vadd.f32 %v986, %v987
        %v989 = vsel %vm542, %v981, 0.0
        %v990 = vadd.f32 %v988, %v989
        %v991 = vld [vmem:[%s6] sm:$0x1]
        %v993 = vperm.slane %v991, 0
        %v995 = vadd.f32 %v990, %v993
        %v996 = vadd.f32 %v995, %v524
        %v997 = vsel %vm542, %v996, 0.0
        %998 = vadd.xlane.f32.xlu0 %v997
        %v999 = vpop.xlane.xlu0 %998
        %v1000 = vrcp.pop 32.0
        %v1001 = vmul.f32 32.0, %v1000
        %v1002 = vsub.f32 1.0, %v1001
        %v1003 = vmul.f32 %v1000, %v1002
        %v1004 = vadd.f32 %v1000, %v1003
        %vm1005 = vweird.f32 %v1000
        %v1006 = vsel %vm1005, %v1000, %v1004
        %v1007 = vmul.f32 %v999, %v1006
        %v1008 = vsub.f32 %v996, %v1007
        %v1009 = vmul.f32 %v1008, %v1008
        %v1010 = vsel %vm542, %v1009, 0.0
        %1011 = vadd.xlane.f32.xlu0 %v1010
        %v1012 = vpop.xlane.xlu0 %1011
        %v1013 = vmul.f32 %v1012, 0.032258064
        %v1014 = vadd.f32 %v1013, 1e-05
        %v1015 = vrsqrt.pop %v1014
        %v1016 = vmul.f32 %v1015, %v1014
        %v1017 = vmul.f32 %v1016, %v1015
        %v1018 = vmul.f32 0.5, %v1017
        %v1019 = vsub.f32 1.5, %v1018
        %v1020 = vmul.f32 %v1015, %v1019
        %vm1021 = vweird.f32 %v1014
        %vm1022 = vweird.f32 %v1015
        %vm1023 = vmor %vm1021, %vm1022
        %v1024 = vsel %vm1023, %v1015, %v1020
        %v1025 = vmul.f32 %v1008, %v1024
        %v1026 = vld [vmem:[%s7] sm:$0x1]
        %v1028 = vperm.slane %v1026, 0
        %v1030 = vmul.f32 %v1028, %v1025
        %v1031 = vld [vmem:[%s8] sm:$0x1]
        %v1033 = vperm.slane %v1031, 0
        %v1035 = vadd.f32 %v1030, %v1033
        %1036 = vst.msk [vmem:[%s522] sm:$0xff] %vm542, %v1035
        %s1037 = sand.u32 %s268, 1
        %s1038 = scalar_lea.sflag [#allocation4], %s1037
        %s1039 = sand.u32 %s268, 1
        %s1040 = smul.addr %s1039, 8
        %s1041 = scalar_lea.vmem [#allocation13], %s1040
        // Predicated region
        $region81: #{tpu_custom_call.1} parent=55 // pred_check
          %p1042 = pneg %p278
        $region82: #{tpu_custom_call.1} parent=55 // pred_check_branch
          %1044 = sbr.rel (%p1042) target = $region84
        $region83: #{tpu_custom_call.1} parent=55 // pred_region
          %1046 = vsyncadd %s1038, 0
          %s1047 = sadd.s32 %s38, %s37
          %s1048 = smul.addr %s1047, 8
          %s1049 = scalar_lea.hbm %s9, %s1048
          %s1051 = sshll.u32 %s1041, 4
          %s1052 = int_to_ptr.vmem [resolvable:$true] %s1051
          %s1053 = sshll.u32 %s1049, 4
          %s1054 = int_to_ptr.hbm [resolvable:$true] %s1053
          %1056 = dma.vmem_to_hbm [thread:$0]  %s1052, 128, %s1054, %s1038
        $region84: #{tpu_custom_call.1} parent=55 // pred_fallthru
          _
      $region56: #{tpu_custom_call.1} parent=5 // pred_fallthru
        _
      %p1057 = scmp.le.s32.totalorder 2, %s28
      // Predicated region
      $region85: #{tpu_custom_call.1} parent=5 // pred_check
        %p1058 = pneg %p1057
      $region86: #{tpu_custom_call.1} parent=5 // pred_check_branch
        %1060 = sbr.rel (%p1058) target = $region88
      $region87: #{tpu_custom_call.1} parent=5 // pred_region
        %s1061 = ssub.s32 %s28, 2
        // Predicated region
        $region89: #{tpu_custom_call.1} parent=87 // pred_check
          %p1062 = pneg %p284
        $region90: #{tpu_custom_call.1} parent=87 // pred_check_branch
          %1064 = sbr.rel (%p1062) target = $region92
        $region91: #{tpu_custom_call.1} parent=87 // pred_region
          %s1065 = sand.u32 %s269, 1
          %s1066 = scalar_lea.sflag [#allocation4], %s1065
          %s1067 = sand.u32 %s269, 1
          %s1068 = smul.addr %s1067, 8
          %s1069 = scalar_lea.vmem [#allocation13], %s1068
          %1071 = dma.done %s1066, 128
        $region92: #{tpu_custom_call.1} parent=87 // pred_fallthru
          _
      $region88: #{tpu_custom_call.1} parent=5 // pred_fallthru
        _
    $region6: #{tpu_custom_call.1} parent=1 // loop_footer
      %s32 = sadd.s32 1, %s28
    $region7: #{tpu_custom_call.1} parent=1 // loop_footer_branch
      %27 = sbr.rel target = $region3
    $region8: #{tpu_custom_call.1} parent=1 // loop_exit
      _
    %1072 = vsyncpa [#allocation3], 1
    %s1073 = scalar_lea.sflag [#allocation3], 1
    %1074 = vsyncpa %s1073, 1
    %1075 = vsyncpa [#allocation6], 1
    %s1076 = scalar_lea.sflag [#allocation6], 1
    %1077 = vsyncpa %s1076, 1
    %1078 = vsyncpa [#allocation9], 1
    %s1079 = scalar_lea.sflag [#allocation9], 1
    %1080 = vsyncpa %s1079, 1
    %1081 = vsyncpa [#allocation12], 1
    %1082 = vsyncpa [#allocation4], 1
    %s1083 = scalar_lea.sflag [#allocation4], 1
    %1084 = vsyncpa %s1083, 1

// kernel: tpu_custom_call.1
$region0: #{tpu_custom_call.1}
  #allocation0 [shape = 'u32[]', space=smem, size = 0x4, offset = 0x4, fixed_abs, tag = 'smem constant byte address 0x4 - core index']
  #allocation1 [shape = 'u32[72,128]{1,0:T(1,128)}', space=vmem, size = 0x9000, scoped, tag = 'internal scratch']
  %s0 = inlined_call_operand.hbm [shape: f32[2,8,32], index: 0, kind: input, shape index: {}]
  %s1 = inlined_call_operand.hbm [shape: bf16[2,4,8,8], index: 1, kind: input, shape index: {}]
  %s2 = inlined_call_operand.hbm [shape: bf16[2,4,8,8], index: 2, kind: input, shape index: {}]
  %s3 = inlined_call_operand.hbm [shape: bf16[2,8,8], index: 3, kind: input, shape index: {}]
  %s4 = inlined_call_operand.hbm [shape: bf16[32,32], index: 4, kind: input, shape index: {}]
  %s5 = inlined_call_operand.hbm [shape: bf16[4,8,32], index: 5, kind: input, shape index: {}]
  %s6 = inlined_call_operand.vmem [shape: f32[1,32], index: 6, kind: input, shape index: {}]
  %s7 = inlined_call_operand.vmem [shape: f32[1,32], index: 7, kind: input, shape index: {}]
  %s8 = inlined_call_operand.vmem [shape: f32[1,32], index: 8, kind: input, shape index: {}]
  %s9 = inlined_call_operand.hbm [shape: f32[2,8,32], index: 9, kind: output, shape index: {}]
  %s10 = sld [smem:[#allocation0]]
  $region93: #{tpu_custom_call.1} parent=0
    _
  %s12 = ssub.s32 1, %s10
  %s13 = scalar_select 0, %s12, %s10
  $region1: #{tpu_custom_call.1} parent=0
    #allocation2 [shape = 'u8[8192]{0}', space=vmem, size = 0x2000, scoped, tag = 'input window, operand 0']
    #allocation3 [shape = 's32[2]{0}', space=sflag, size = 0x8, scoped, tag = 'scoped memory for tpu_custom_call.1']
    #allocation4 [shape = 's32[2]{0}', space=sflag, size = 0x8, scoped, tag = 'scoped memory for tpu_custom_call.1']
    #allocation5 [shape = 'u8[16384]{0}', space=vmem, size = 0x4000, scoped, tag = 'input window, operand 1']
    #allocation6 [shape = 's32[2]{0}', space=sflag, size = 0x8, scoped, tag = 'scoped memory for tpu_custom_call.1']
    #allocation7 [shape = 'u8[16384]{0}', space=vmem, size = 0x4000, scoped, tag = 'input window, operand 2']
    #allocation8 [shape = 'u8[4096]{0}', space=vmem, size = 0x1000, scoped, tag = 'input window, operand 3']
    #allocation9 [shape = 's32[2]{0}', space=sflag, size = 0x8, scoped, tag = 'scoped memory for tpu_custom_call.1']
    #allocation10 [shape = 'u8[8192]{0}', space=vmem, size = 0x2000, scoped, tag = 'input window, operand 4, single buffered']
    #allocation11 [shape = 'u8[8192]{0}', space=vmem, size = 0x2000, scoped, tag = 'input window, operand 5, single buffered']
    #allocation12 [shape = 's32[1]{0}', space=sflag, size = 0x4, scoped, tag = 'scoped memory for tpu_custom_call.1']
    #allocation13 [shape = 'u8[8192]{0}', space=vmem, size = 0x2000, scoped, tag = 'output window, operand 0']
    %14 = vsyncpa [#allocation3], 0
    %s15 = scalar_lea.sflag [#allocation3], 1
    %16 = vsyncpa %s15, 0
    %17 = vsyncpa [#allocation6], 0
    %s18 = scalar_lea.sflag [#allocation6], 1
    %19 = vsyncpa %s18, 0
    %20 = vsyncpa [#allocation9], 0
    %s21 = scalar_lea.sflag [#allocation9], 1
    %22 = vsyncpa %s21, 0
    %23 = vsyncpa [#allocation12], 0
    %24 = vsyncpa [#allocation4], 0
    %s25 = scalar_lea.sflag [#allocation4], 1
    %26 = vsyncpa %s25, 0
    loop: start=0, step=1, limit=4
    $region2: #{tpu_custom_call.1} parent=1 // loop_pre_header
      _
    $region3: #{tpu_custom_call.1} parent=1 // loop_header
      %s28 = sphi 0, %s32
      %p29 = scmp.ge.s32.totalorder %s28, 4
      %s35 = sphi 0, %s47
      %s36 = sphi 0, %s43
      %s37 = sphi 0, %s35
      %s38 = sphi 0, %s36
      %s39 = sphi 0, %s37
      %s40 = sphi 0, %s38
      %s52 = sphi 0, %s54
      %s55 = sphi 0, %s52
      %s56 = sphi 0, %s55
      %s72 = sphi 0, %s56
      %s78 = sphi 0, %s80
      %s81 = sphi 0, %s78
      %s82 = sphi 0, %s81
      %s98 = sphi 0, %s82
      %s104 = sphi 0, %s106
      %s107 = sphi 0, %s104
      %s108 = sphi 0, %s107
      %s124 = sphi 0, %s108
      %s132 = sphi 0, %s134
      %s135 = sphi 0, %s132
      %s136 = sphi 0, %s135
      %s152 = sphi 0, %s136
      %s156 = sphi 0, %s156
      %s158 = sphi 0, %s156
      %s159 = sphi 0, %s158
      %s173 = sphi 0, %s159
      %s177 = sphi 0, %s177
      %s179 = sphi 0, %s177
      %s180 = sphi 0, %s179
      %s194 = sphi 0, %s180
      %s198 = sphi 0, %s198
      %s200 = sphi 0, %s198
      %s201 = sphi 0, %s200
      %s215 = sphi 0, %s201
      %s219 = sphi 0, %s219
      %s221 = sphi 0, %s219
      %s222 = sphi 0, %s221
      %s236 = sphi 0, %s222
      %s240 = sphi 0, %s240
      %s242 = sphi 0, %s240
      %s243 = sphi 0, %s242
      %s257 = sphi 0, %s243
      %s265 = sphi 0, %s267
      %s268 = sphi 0, %s265
      %s269 = sphi 0, %s268
      %s285 = sphi 0, %s269
    $region4: #{tpu_custom_call.1} parent=1 // loop_header_branch
      %31 = sbr.rel (%p29) target = $region8
    $region5: #{tpu_custom_call.1} parent=1 // loop_body
      %s33 = ssub.s32 %s28, 1
      %s34 = ssub.s32 %s28, 2
      %s41 = sadd.s32 1, %s36
      %p42 = scmp.ge.s32.totalorder %s41, 1
      %s43 = scalar_select %p42, 0, %s41
      %s44 = sadd.s32 1, %s35
      %s45 = scalar_select %p42, %s44, %s35
      %p46 = scmp.ge.s32.totalorder %s45, 2
      %s47 = scalar_select %p46, 0, %s45
      %s48 = ssub.s32 %s35, %s47
      %s49 = ssub.s32 %s36, %s43
      %s50 = sor.u32 %s48, %s49
      %p51 = scmp.eq.s32.totalorder %s50, 0
      %s53 = sadd.s32 %s52, 1
      %s54 = scalar_select %p51, %s52, %s53
      %p57 = pneg %p51
      %p58 = scmp.eq.s32.totalorder %s28, 1
      %p59 = por %p57, %p58
      %p60 = scmp.ne.s32.totalorder %s52, %s55
      %p61 = scmp.eq.s32.totalorder %s28, 0
      %p62 = por %p60, %p61
      %p63 = scmp.ne.s32.totalorder %s52, %s55
      %p64 = scmp.eq.s32.totalorder %s33, 1
      %p65 = por %p63, %p64
      %p66 = scmp.ne.s32.totalorder %s55, %s56
      %p67 = scmp.eq.s32.totalorder %s33, 0
      %p68 = por %p66, %p67
      %p69 = scmp.ne.s32.totalorder %s55, %s56
      %p70 = scmp.eq.s32.totalorder %s34, 1
      %p71 = por %p69, %p70
      %p73 = scmp.ne.s32.totalorder %s56, %s72
      %p74 = scmp.eq.s32.totalorder %s34, 0
      %p75 = por %p73, %p74
      %s76 = ssub.s32 %s35, %s47
      %p77 = scmp.eq.s32.totalorder %s76, 0
      %s79 = sadd.s32 %s78, 1
      %s80 = scalar_select %p77, %s78, %s79
      %p83 = pneg %p77
      %p84 = scmp.eq.s32.totalorder %s28, 1
      %p85 = por %p83, %p84
      %p86 = scmp.ne.s32.totalorder %s78, %s81
      %p87 = scmp.eq.s32.totalorder %s28, 0
      %p88 = por %p86, %p87
      %p89 = scmp.ne.s32.totalorder %s78, %s81
      %p90 = scmp.eq.s32.totalorder %s33, 1
      %p91 = por %p89, %p90
      %p92 = scmp.ne.s32.totalorder %s81, %s82
      %p93 = scmp.eq.s32.totalorder %s33, 0
      %p94 = por %p92, %p93
      %p95 = scmp.ne.s32.totalorder %s81, %s82
      %p96 = scmp.eq.s32.totalorder %s34, 1
      %p97 = por %p95, %p96
      %p99 = scmp.ne.s32.totalorder %s82, %s98
      %p100 = scmp.eq.s32.totalorder %s34, 0
      %p101 = por %p99, %p100
      %s102 = ssub.s32 %s35, %s47
      %p103 = scmp.eq.s32.totalorder %s102, 0
      %s105 = sadd.s32 %s104, 1
      %s106 = scalar_select %p103, %s104, %s105
      %p109 = pneg %p103
      %p110 = scmp.eq.s32.totalorder %s28, 1
      %p111 = por %p109, %p110
      %p112 = scmp.ne.s32.totalorder %s104, %s107
      %p113 = scmp.eq.s32.totalorder %s28, 0
      %p114 = por %p112, %p113
      %p115 = scmp.ne.s32.totalorder %s104, %s107
      %p116 = scmp.eq.s32.totalorder %s33, 1
      %p117 = por %p115, %p116
      %p118 = scmp.ne.s32.totalorder %s107, %s108
      %p119 = scmp.eq.s32.totalorder %s33, 0
      %p120 = por %p118, %p119
      %p121 = scmp.ne.s32.totalorder %s107, %s108
      %p122 = scmp.eq.s32.totalorder %s34, 1
      %p123 = por %p121, %p122
      %p125 = scmp.ne.s32.totalorder %s108, %s124
      %p126 = scmp.eq.s32.totalorder %s34, 0
      %p127 = por %p125, %p126
      %s128 = ssub.s32 %s35, %s47
      %s129 = ssub.s32 %s36, %s43
      %s130 = sor.u32 %s128, %s129
      %p131 = scmp.eq.s32.totalorder %s130, 0
      %s133 = sadd.s32 %s132, 1
      %s134 = scalar_select %p131, %s132, %s133
      %p137 = pneg %p131
      %p138 = scmp.eq.s32.totalorder %s28, 1
      %p139 = por %p137, %p138
      %p140 = scmp.ne.s32.totalorder %s132, %s135
      %p141 = scmp.eq.s32.totalorder %s28, 0
      %p142 = por %p140, %p141
      %p143 = scmp.ne.s32.totalorder %s132, %s135
      %p144 = scmp.eq.s32.totalorder %s33, 1
      %p145 = por %p143, %p144
      %p146 = scmp.ne.s32.totalorder %s135, %s136
      %p147 = scmp.eq.s32.totalorder %s33, 0
      %p148 = por %p146, %p147
      %p149 = scmp.ne.s32.totalorder %s135, %s136
      %p150 = scmp.eq.s32.totalorder %s34, 1
      %p151 = por %p149, %p150
      %p153 = scmp.ne.s32.totalorder %s136, %s152
      %p154 = scmp.eq.s32.totalorder %s34, 0
      %p155 = por %p153, %p154
      %s157 = sadd.s32 %s156, 1
      %p160 = scmp.eq.s32.totalorder %s28, 1
      %p161 = scmp.ne.s32.totalorder %s156, %s158
      %p162 = scmp.eq.s32.totalorder %s28, 0
      %p163 = por %p161, %p162
      %p164 = scmp.ne.s32.totalorder %s156, %s158
      %p165 = scmp.eq.s32.totalorder %s33, 1
      %p166 = por %p164, %p165
      %p167 = scmp.ne.s32.totalorder %s158, %s159
      %p168 = scmp.eq.s32.totalorder %s33, 0
      %p169 = por %p167, %p168
      %p170 = scmp.ne.s32.totalorder %s158, %s159
      %p171 = scmp.eq.s32.totalorder %s34, 1
      %p172 = por %p170, %p171
      %p174 = scmp.ne.s32.totalorder %s159, %s173
      %p175 = scmp.eq.s32.totalorder %s34, 0
      %p176 = por %p174, %p175
      %s178 = sadd.s32 %s177, 1
      %p181 = scmp.eq.s32.totalorder %s28, 1
      %p182 = scmp.ne.s32.totalorder %s177, %s179
      %p183 = scmp.eq.s32.totalorder %s28, 0
      %p184 = por %p182, %p183
      %p185 = scmp.ne.s32.totalorder %s177, %s179
      %p186 = scmp.eq.s32.totalorder %s33, 1
      %p187 = por %p185, %p186
      %p188 = scmp.ne.s32.totalorder %s179, %s180
      %p189 = scmp.eq.s32.totalorder %s33, 0
      %p190 = por %p188, %p189
      %p191 = scmp.ne.s32.totalorder %s179, %s180
      %p192 = scmp.eq.s32.totalorder %s34, 1
      %p193 = por %p191, %p192
      %p195 = scmp.ne.s32.totalorder %s180, %s194
      %p196 = scmp.eq.s32.totalorder %s34, 0
      %p197 = por %p195, %p196
      %s199 = sadd.s32 %s198, 1
      %p202 = scmp.eq.s32.totalorder %s28, 1
      %p203 = scmp.ne.s32.totalorder %s198, %s200
      %p204 = scmp.eq.s32.totalorder %s28, 0
      %p205 = por %p203, %p204
      %p206 = scmp.ne.s32.totalorder %s198, %s200
      %p207 = scmp.eq.s32.totalorder %s33, 1
      %p208 = por %p206, %p207
      %p209 = scmp.ne.s32.totalorder %s200, %s201
      %p210 = scmp.eq.s32.totalorder %s33, 0
      %p211 = por %p209, %p210
      %p212 = scmp.ne.s32.totalorder %s200, %s201
      %p213 = scmp.eq.s32.totalorder %s34, 1
      %p214 = por %p212, %p213
      %p216 = scmp.ne.s32.totalorder %s201, %s215
      %p217 = scmp.eq.s32.totalorder %s34, 0
      %p218 = por %p216, %p217
      %s220 = sadd.s32 %s219, 1
      %p223 = scmp.eq.s32.totalorder %s28, 1
      %p224 = scmp.ne.s32.totalorder %s219, %s221
      %p225 = scmp.eq.s32.totalorder %s28, 0
      %p226 = por %p224, %p225
      %p227 = scmp.ne.s32.totalorder %s219, %s221
      %p228 = scmp.eq.s32.totalorder %s33, 1
      %p229 = por %p227, %p228
      %p230 = scmp.ne.s32.totalorder %s221, %s222
      %p231 = scmp.eq.s32.totalorder %s33, 0
      %p232 = por %p230, %p231
      %p233 = scmp.ne.s32.totalorder %s221, %s222
      %p234 = scmp.eq.s32.totalorder %s34, 1
      %p235 = por %p233, %p234
      %p237 = scmp.ne.s32.totalorder %s222, %s236
      %p238 = scmp.eq.s32.totalorder %s34, 0
      %p239 = por %p237, %p238
      %s241 = sadd.s32 %s240, 1
      %p244 = scmp.eq.s32.totalorder %s28, 1
      %p245 = scmp.ne.s32.totalorder %s240, %s242
      %p246 = scmp.eq.s32.totalorder %s28, 0
      %p247 = por %p245, %p246
      %p248 = scmp.ne.s32.totalorder %s240, %s242
      %p249 = scmp.eq.s32.totalorder %s33, 1
      %p250 = por %p248, %p249
      %p251 = scmp.ne.s32.totalorder %s242, %s243
      %p252 = scmp.eq.s32.totalorder %s33, 0
      %p253 = por %p251, %p252
      %p254 = scmp.ne.s32.totalorder %s242, %s243
      %p255 = scmp.eq.s32.totalorder %s34, 1
      %p256 = por %p254, %p255
      %p258 = scmp.ne.s32.totalorder %s243, %s257
      %p259 = scmp.eq.s32.totalorder %s34, 0
      %p260 = por %p258, %p259
      %s261 = ssub.s32 %s35, %s47
      %s262 = ssub.s32 %s36, %s43
      %s263 = sor.u32 %s261, %s262
      %p264 = scmp.eq.s32.totalorder %s263, 0
      %s266 = sadd.s32 %s265, 1
      %s267 = scalar_select %p264, %s265, %s266
      %p270 = pneg %p264
      %p271 = scmp.eq.s32.totalorder %s28, 1
      %p272 = por %p270, %p271
      %p273 = scmp.ne.s32.totalorder %s265, %s268
      %p274 = scmp.eq.s32.totalorder %s28, 0
      %p275 = por %p273, %p274
      %p276 = scmp.ne.s32.totalorder %s265, %s268
      %p277 = scmp.eq.s32.totalorder %s33, 1
      %p278 = por %p276, %p277
      %p279 = scmp.ne.s32.totalorder %s268, %s269
      %p280 = scmp.eq.s32.totalorder %s33, 0
      %p281 = por %p279, %p280
      %p282 = scmp.ne.s32.totalorder %s268, %s269
      %p283 = scmp.eq.s32.totalorder %s34, 1
      %p284 = por %p282, %p283
      %p286 = scmp.ne.s32.totalorder %s269, %s285
      %p287 = scmp.eq.s32.totalorder %s34, 0
      %p288 = por %p286, %p287
      %p289 = scmp.le.s32.totalorder 1, %s28
      %p290 = scmp.lt.s32.totalorder %s28, 3
      %p291 = pnand %p289, %p290
      %p292 = pneg %p291
      // Predicated region
      $region9: #{tpu_custom_call.1} parent=5 // pred_check
        _
      $region10: #{tpu_custom_call.1} parent=5 // pred_check_branch
        %294 = sbr.rel (%p291) target = $region12
      $region11: #{tpu_custom_call.1} parent=5 // pred_region
        %s295 = ssub.s32 %s28, 1
        // Predicated region
        $region13: #{tpu_custom_call.1} parent=11 // pred_check
          %p296 = pneg %p169
        $region14: #{tpu_custom_call.1} parent=11 // pred_check_branch
          %298 = sbr.rel (%p296) target = $region16
        $region15: #{tpu_custom_call.1} parent=11 // pred_region
          %300 = vsyncadd [#allocation9], 0
          %s301 = sshll.u32 %s4, 4
          %s302 = int_to_ptr.hbm [resolvable:$true] %s301
          %s303 = sshll.u32 [#allocation10], 4
          %s304 = int_to_ptr.vmem [resolvable:$true] %s303
          %309 = dma.hbm_to_vmem [thread:$0]  %s302, 256, %s304, [#allocation9], 64, 64, 4
        $region16: #{tpu_custom_call.1} parent=11 // pred_fallthru
          _
        // Predicated region
        $region17: #{tpu_custom_call.1} parent=11 // pred_check
          %p310 = pneg %p190
        $region18: #{tpu_custom_call.1} parent=11 // pred_check_branch
          %312 = sbr.rel (%p310) target = $region20
        $region19: #{tpu_custom_call.1} parent=11 // pred_region
          %314 = vsyncadd [#allocation12], 0
          %s315 = sshll.u32 %s5, 4
          %s316 = int_to_ptr.hbm [resolvable:$true] %s315
          %s317 = sshll.u32 [#allocation11], 4
          %s318 = int_to_ptr.vmem [resolvable:$true] %s317
          %323 = dma.hbm_to_vmem [thread:$0]  %s316, 256, %s318, [#allocation12], 64, 64, 4
        $region20: #{tpu_custom_call.1} parent=11 // pred_fallthru
          _
        // Predicated region
        $region21: #{tpu_custom_call.1} parent=11 // pred_check
          %p324 = pneg %p211
        $region22: #{tpu_custom_call.1} parent=11 // pred_check_branch
          %326 = sbr.rel (%p324) target = $region24
        $region23: #{tpu_custom_call.1} parent=11 // pred_region
          _
        $region24: #{tpu_custom_call.1} parent=11 // pred_fallthru
          _
        // Predicated region
        $region25: #{tpu_custom_call.1} parent=11 // pred_check
          %p327 = pneg %p232
        $region26: #{tpu_custom_call.1} parent=11 // pred_check_branch
          %329 = sbr.rel (%p327) target = $region28
        $region27: #{tpu_custom_call.1} parent=11 // pred_region
          _
        $region28: #{tpu_custom_call.1} parent=11 // pred_fallthru
          _
        // Predicated region
        $region29: #{tpu_custom_call.1} parent=11 // pred_check
          %p330 = pneg %p253
        $region30: #{tpu_custom_call.1} parent=11 // pred_check_branch
          %332 = sbr.rel (%p330) target = $region32
        $region31: #{tpu_custom_call.1} parent=11 // pred_region
          _
        $region32: #{tpu_custom_call.1} parent=11 // pred_fallthru
          _
      $region12: #{tpu_custom_call.1} parent=5 // pred_fallthru
        _
      %p333 = scmp.lt.s32.totalorder %s28, 2
      // Predicated region
      $region33: #{tpu_custom_call.1} parent=5 // pred_check
        %p334 = pneg %p333
      $region34: #{tpu_custom_call.1} parent=5 // pred_check_branch
        %336 = sbr.rel (%p334) target = $region36
      $region35: #{tpu_custom_call.1} parent=5 // pred_region
        // Predicated region
        $region37: #{tpu_custom_call.1} parent=35 // pred_check
          %p337 = pneg %p62
        $region38: #{tpu_custom_call.1} parent=35 // pred_check_branch
          %339 = sbr.rel (%p337) target = $region40
        $region39: #{tpu_custom_call.1} parent=35 // pred_region
          %s340 = sand.u32 %s52, 1
          %s341 = scalar_lea.sflag [#allocation3], %s340
          %s342 = sand.u32 %s52, 1
          %s343 = smul.addr %s342, 8
          %s344 = scalar_lea.vmem [#allocation2], %s343
          %346 = vsyncadd %s341, 0
          %s347 = sadd.s32 %s36, %s35
          %s348 = smul.addr %s347, 8
          %s349 = scalar_lea.hbm %s0, %s348
          %s351 = sshll.u32 %s349, 4
          %s352 = int_to_ptr.hbm [resolvable:$true] %s351
          %s353 = sshll.u32 %s344, 4
          %s354 = int_to_ptr.vmem [resolvable:$true] %s353
          %356 = dma.hbm_to_vmem [thread:$0]  %s352, 128, %s354, %s341
        $region40: #{tpu_custom_call.1} parent=35 // pred_fallthru
          _
        // Predicated region
        $region41: #{tpu_custom_call.1} parent=35 // pred_check
          %p357 = pneg %p88
        $region42: #{tpu_custom_call.1} parent=35 // pred_check_branch
          %359 = sbr.rel (%p357) target = $region44
        $region43: #{tpu_custom_call.1} parent=35 // pred_region
          %s360 = sand.u32 %s28, 1
          %s361 = scalar_lea.sflag [#allocation6], %s360
          %s362 = sand.u32 %s78, 1
          %s363 = smul.addr %s362, 16
          %s364 = scalar_lea.vmem [#allocation5], %s363
          %366 = vsyncadd %s361, 0
          %s367 = smul.addr %s35, 4
          %s368 = smul.addr %s367, 4
          %s369 = scalar_lea.hbm %s1, %s368
          %s370 = sshll.u32 %s369, 4
          %s371 = int_to_ptr.hbm [resolvable:$true] %s370
          %s372 = sshll.u32 %s364, 4
          %s373 = int_to_ptr.vmem [resolvable:$true] %s372
          %378 = dma.hbm_to_vmem [thread:$0]  %s371, 256, %s373, %s361, 64, 64, 4
        $region44: #{tpu_custom_call.1} parent=35 // pred_fallthru
          _
        // Predicated region
        $region45: #{tpu_custom_call.1} parent=35 // pred_check
          %p379 = pneg %p114
        $region46: #{tpu_custom_call.1} parent=35 // pred_check_branch
          %381 = sbr.rel (%p379) target = $region48
        $region47: #{tpu_custom_call.1} parent=35 // pred_region
          %s382 = sand.u32 %s28, 1
          %s383 = scalar_lea.sflag [#allocation6], %s382
          %s384 = sand.u32 %s104, 1
          %s385 = smul.addr %s384, 16
          %s386 = scalar_lea.vmem [#allocation7], %s385
          %388 = vsyncadd %s383, 0
          %s389 = smul.addr %s35, 4
          %s390 = smul.addr %s389, 4
          %s391 = scalar_lea.hbm %s2, %s390
          %s392 = sshll.u32 %s391, 4
          %s393 = int_to_ptr.hbm [resolvable:$true] %s392
          %s394 = sshll.u32 %s386, 4
          %s395 = int_to_ptr.vmem [resolvable:$true] %s394
          %400 = dma.hbm_to_vmem [thread:$0]  %s393, 256, %s395, %s383, 64, 64, 4
        $region48: #{tpu_custom_call.1} parent=35 // pred_fallthru
          _
        // Predicated region
        $region49: #{tpu_custom_call.1} parent=35 // pred_check
          %p401 = pneg %p142
        $region50: #{tpu_custom_call.1} parent=35 // pred_check_branch
          %403 = sbr.rel (%p401) target = $region52
        $region51: #{tpu_custom_call.1} parent=35 // pred_region
          %s404 = sand.u32 %s28, 1
          %s405 = scalar_lea.sflag [#allocation9], %s404
          %s406 = sand.u32 %s132, 1
          %s407 = smul.addr %s406, 4
          %s408 = scalar_lea.vmem [#allocation8], %s407
          %410 = vsyncadd %s405, 0
          %s411 = sadd.s32 %s36, %s35
          %s412 = smul.addr %s411, 4
          %s413 = scalar_lea.hbm %s3, %s412
          %s415 = sshll.u32 %s413, 4
          %s416 = int_to_ptr.hbm [resolvable:$true] %s415
          %s417 = sshll.u32 %s408, 4
          %s418 = int_to_ptr.vmem [resolvable:$true] %s417
          %420 = dma.hbm_to_vmem [thread:$0]  %s416, 64, %s418, %s405
        $region52: #{tpu_custom_call.1} parent=35 // pred_fallthru
          _
      $region36: #{tpu_custom_call.1} parent=5 // pred_fallthru
        _
      %p421 = scmp.le.s32.totalorder 1, %s28
      %p422 = scmp.lt.s32.totalorder %s28, 3
      %p423 = pnand %p421, %p422
      %p424 = pneg %p423
      // Predicated region
      $region53: #{tpu_custom_call.1} parent=5 // pred_check
        _
      $region54: #{tpu_custom_call.1} parent=5 // pred_check_branch
        %426 = sbr.rel (%p423) target = $region56
      $region55: #{tpu_custom_call.1} parent=5 // pred_region
        %s427 = ssub.s32 %s28, 1
        %s428 = sand.u32 %s55, 1
        %s429 = scalar_lea.sflag [#allocation3], %s428
        %s430 = sand.u32 %s55, 1
        %s431 = smul.addr %s430, 8
        %s432 = scalar_lea.vmem [#allocation2], %s431
        // Predicated region
        $region57: #{tpu_custom_call.1} parent=55 // pred_check
          %p433 = pneg %p68
        $region58: #{tpu_custom_call.1} parent=55 // pred_check_branch
          %435 = sbr.rel (%p433) target = $region60
        $region59: #{tpu_custom_call.1} parent=55 // pred_region
          %437 = dma.done %s429, 128
        $region60: #{tpu_custom_call.1} parent=55 // pred_fallthru
          _
        %s438 = sand.u32 %s33, 1
        %s439 = scalar_lea.sflag [#allocation6], %s438
        %s440 = sand.u32 %s81, 1
        %s441 = smul.addr %s440, 16
        %s442 = scalar_lea.vmem [#allocation5], %s441
        // Predicated region
        $region61: #{tpu_custom_call.1} parent=55 // pred_check
          %p443 = pneg %p94
        $region62: #{tpu_custom_call.1} parent=55 // pred_check_branch
          %445 = sbr.rel (%p443) target = $region64
        $region63: #{tpu_custom_call.1} parent=55 // pred_region
          %447 = dma.done %s439, 256
        $region64: #{tpu_custom_call.1} parent=55 // pred_fallthru
          _
        %s448 = sand.u32 %s33, 1
        %s449 = scalar_lea.sflag [#allocation6], %s448
        %s450 = sand.u32 %s107, 1
        %s451 = smul.addr %s450, 16
        %s452 = scalar_lea.vmem [#allocation7], %s451
        // Predicated region
        $region65: #{tpu_custom_call.1} parent=55 // pred_check
          %p453 = pneg %p120
        $region66: #{tpu_custom_call.1} parent=55 // pred_check_branch
          %455 = sbr.rel (%p453) target = $region68
        $region67: #{tpu_custom_call.1} parent=55 // pred_region
          %457 = dma.done %s449, 256
        $region68: #{tpu_custom_call.1} parent=55 // pred_fallthru
          _
        %s458 = sand.u32 %s33, 1
        %s459 = scalar_lea.sflag [#allocation9], %s458
        %s460 = sand.u32 %s135, 1
        %s461 = smul.addr %s460, 4
        %s462 = scalar_lea.vmem [#allocation8], %s461
        // Predicated region
        $region69: #{tpu_custom_call.1} parent=55 // pred_check
          %p463 = pneg %p148
        $region70: #{tpu_custom_call.1} parent=55 // pred_check_branch
          %465 = sbr.rel (%p463) target = $region72
        $region71: #{tpu_custom_call.1} parent=55 // pred_region
          %467 = dma.done %s459, 64
        $region72: #{tpu_custom_call.1} parent=55 // pred_fallthru
          _
        // Predicated region
        $region73: #{tpu_custom_call.1} parent=55 // pred_check
          %p468 = pneg %p169
        $region74: #{tpu_custom_call.1} parent=55 // pred_check_branch
          %470 = sbr.rel (%p468) target = $region76
        $region75: #{tpu_custom_call.1} parent=55 // pred_region
          %472 = dma.done [#allocation9], 256
        $region76: #{tpu_custom_call.1} parent=55 // pred_fallthru
          _
        // Predicated region
        $region77: #{tpu_custom_call.1} parent=55 // pred_check
          %p473 = pneg %p190
        $region78: #{tpu_custom_call.1} parent=55 // pred_check_branch
          %475 = sbr.rel (%p473) target = $region80
        $region79: #{tpu_custom_call.1} parent=55 // pred_region
          %477 = dma.done [#allocation12], 256
        $region80: #{tpu_custom_call.1} parent=55 // pred_fallthru
          _
        %s478 = sand.u32 %s55, 1
        %s479 = scalar_lea.sflag [#allocation3], %s478
        %s480 = sand.u32 %s55, 1
        %s481 = smul.addr %s480, 8
        %s482 = scalar_lea.vmem [#allocation2], %s481
        %p483 = pneg %p68
        %p484 = pneg %p65
        %s485 = sand.u32 %s33, 1
        %s486 = scalar_lea.sflag [#allocation6], %s485
        %s487 = sand.u32 %s81, 1
        %s488 = smul.addr %s487, 16
        %s489 = scalar_lea.vmem [#allocation5], %s488
        %p490 = pneg %p94
        %p491 = pneg %p91
        %s492 = sand.u32 %s33, 1
        %s493 = scalar_lea.sflag [#allocation6], %s492
        %s494 = sand.u32 %s107, 1
        %s495 = smul.addr %s494, 16
        %s496 = scalar_lea.vmem [#allocation7], %s495
        %p497 = pneg %p120
        %p498 = pneg %p117
        %s499 = sand.u32 %s33, 1
        %s500 = scalar_lea.sflag [#allocation9], %s499
        %s501 = sand.u32 %s135, 1
        %s502 = smul.addr %s501, 4
        %s503 = scalar_lea.vmem [#allocation8], %s502
        %p504 = pneg %p148
        %p505 = pneg %p145
        %p506 = pneg %p169
        %p507 = pneg %p166
        %p508 = pneg %p190
        %p509 = pneg %p187
        %p510 = pneg %p211
        %p511 = pneg %p208
        %p512 = pneg %p232
        %p513 = pneg %p229
        %p514 = pneg %p253
        %p515 = pneg %p250
        %p516 = pneg %p281
        %p517 = pneg %p278
        %s518 = sand.u32 %s268, 1
        %s519 = scalar_lea.sflag [#allocation4], %s518
        %s520 = sand.u32 %s268, 1
        %s521 = smul.addr %s520, 8
        %s522 = scalar_lea.vmem [#allocation13], %s521
        %v524 = vld [vmem:[%s432] sm:$0xff]
        %v525 = vpack.c.bf16 %v524, %v524
        %v526 = vld [vmem:[#allocation10] sm:$0xf]
        %v527 = vld [vmem:[#allocation10 + $0x4] sm:$0xf]
        %v528 = vld [vmem:[#allocation10 + $0x8] sm:$0xf]
        %v529 = vld [vmem:[#allocation10 + $0xc] sm:$0xf]
        %v534 = vunpack.c.l.b16 %v526
        %v535 = vunpack.c.l.b16 %v527
        %v536 = vunpack.c.l.b16 %v528
        %v537 = vunpack.c.l.b16 %v529
        %v538 = vpack.c.b16 %v535, %v534
        %v539 = vpack.c.b16 %v537, %v536
        %vm542 = vcmask 261120
        %v544 = vsel %vm542, %v525, 0
        %546 = vmatpush.bf16.msra.mxu0 0
        %547 = vmatpush.bf16.msra.mxu0 0
        %548 = vmatpush.bf16.msra.mxu0 0
        %549 = vmatpush.bf16.msra.mxu0 0
        %550 = vmatpush.bf16.msra.mxu0 0
        %551 = vmatpush.bf16.msra.mxu0 0
        %552 = vmatpush.bf16.msra.mxu0 %v539
        %553 = vmatpush.bf16.msra.mxu0 %v538
        %554 = vmatmul.bf16.gmra.mxu0 %v544
        %v555 = vpop.f32.mrf.mxu0
        %v556 = vadd.f32 0.0, %v555
        %v557 = vpop.f32.mrf.mxu0
        %558 = vdwg.mxu0
        %560 = vrot.lane.b32.xlu0 %v556, 120
        %v561 = vpop.permute.xlu0 %560
        %563 = vrot.lane.b32.xlu0 %v556, 112
        %v564 = vpop.permute.xlu0 %563
        %566 = vrot.lane.b32.xlu0 %v556, 104
        %v567 = vpop.permute.xlu0 %566
        %v569 = vrot.slane %v564, 4
        %vm570 = vcmask 1047556
        %v571 = vsel %vm570, %v569, %v556
        %v572 = vrot.slane %v556, 4
        %v573 = vsel %vm570, %v564, %v572
        %v575 = vunpack.c.l.s4 1983009808
        %v576 = vunpack.c.0.s8 %v575
        %v577 = vperm.slane %v571, %v576
        %v579 = vunpack.c.l.s4 1983009808
        %v580 = vunpack.c.0.s8 %v579
        %v581 = vperm.slane %v573, %v580
        %v582 = vrot.slane %v567, 4
        %v583 = vsel %vm570, %v582, %v561
        %v584 = vrot.slane %v561, 4
        %v585 = vsel %vm570, %v567, %v584
        %v587 = vunpack.c.l.s4 1983009808
        %v588 = vunpack.c.0.s8 %v587
        %v589 = vperm.slane %v583, %v588
        %v591 = vunpack.c.l.s4 1983009808
        %v592 = vunpack.c.0.s8 %v591
        %v593 = vperm.slane %v585, %v592
        %v594 = vrot.slane %v589, 4
        %v595 = vsel %vm570, %v594, %v577
        %v596 = vrot.slane %v577, 4
        %v597 = vsel %vm570, %v589, %v596
        %v599 = vunpack.c.l.s4 1934713408
        %v600 = vunpack.c.0.s8 %v599
        %v601 = vperm.slane %v595, %v600
        %v603 = vunpack.c.l.s4 1934713408
        %v604 = vunpack.c.0.s8 %v603
        %v605 = vperm.slane %v597, %v604
        %v606 = vrot.slane %v593, 4
        %v607 = vsel %vm570, %v606, %v581
        %v608 = vrot.slane %v581, 4
        %v609 = vsel %vm570, %v593, %v608
        %v611 = vunpack.c.l.s4 1934713408
        %v612 = vunpack.c.0.s8 %v611
        %v613 = vperm.slane %v607, %v612
        %v615 = vunpack.c.l.s4 1934713408
        %v616 = vunpack.c.0.s8 %v615
        %v617 = vperm.slane %v609, %v616
        %v618 = vrot.slane %v601, 4
        %v619 = vsel %vm570, 0.0, %v618
        %v620 = vrot.slane %v605, 4
        %v621 = vsel %vm570, 0.0, %v620
        %v622 = vrot.slane %v613, 4
        %v623 = vsel %vm570, 0.0, %v622
        %v624 = vrot.slane %v617, 4
        %v625 = vsel %vm570, 0.0, %v624
        %v626 = vsel %vm570, %v620, %v601
        %v628 = vunpack.c.l.s4 1983009808
        %v629 = vunpack.c.0.s8 %v628
        %v630 = vperm.slane %v626, %v629
        %v631 = vrot.slane %v621, 4
        %v632 = vsel %vm570, %v631, %v619
        %v634 = vunpack.c.l.s4 1983009808
        %v635 = vunpack.c.0.s8 %v634
        %v636 = vperm.slane %v632, %v635
        %v637 = vsel %vm570, %v624, %v613
        %v639 = vunpack.c.l.s4 1983009808
        %v640 = vunpack.c.0.s8 %v639
        %v641 = vperm.slane %v637, %v640
        %v642 = vrot.slane %v625, 4
        %v643 = vsel %vm570, %v642, %v623
        %v645 = vunpack.c.l.s4 1983009808
        %v646 = vunpack.c.0.s8 %v645
        %v647 = vperm.slane %v643, %v646
        %v648 = vrot.slane %v636, 4
        %v649 = vsel %vm570, %v648, %v630
        %v650 = vrot.slane %v630, 4
        %v651 = vsel %vm570, %v636, %v650
        %v653 = vunpack.c.l.s4 1934713408
        %v654 = vunpack.c.0.s8 %v653
        %v655 = vperm.slane %v649, %v654
        %v657 = vunpack.c.l.s4 1934713408
        %v658 = vunpack.c.0.s8 %v657
        %v659 = vperm.slane %v651, %v658
        %v660 = vrot.slane %v647, 4
        %v661 = vsel %vm570, %v660, %v641
        %v662 = vrot.slane %v641, 4
        %v663 = vsel %vm570, %v647, %v662
        %v665 = vunpack.c.l.s4 1934713408
        %v666 = vunpack.c.0.s8 %v665
        %v667 = vperm.slane %v661, %v666
        %v669 = vunpack.c.l.s4 1934713408
        %v670 = vunpack.c.0.s8 %v669
        %v671 = vperm.slane %v663, %v670
        %v672 = vrot.slane %v667, 4
        %v673 = vsel %vm570, %v672, %v655
        %v674 = vrot.slane %v655, 4
        %v675 = vsel %vm570, %v667, %v674
        %v676 = vrot.slane %v671, 4
        %v677 = vsel %vm570, %v676, %v659
        %v678 = vrot.slane %v659, 4
        %v679 = vsel %vm570, %v671, %v678
        %v680 = vpack.c.bf16 %v673, %v673
        %v681 = vpack.c.bf16 %v675, %v675
        %v682 = vpack.c.bf16 %v677, %v677
        %v683 = vpack.c.bf16 %v679, %v679
        %v684 = vld [vmem:[%s442] sm:$0xf]
        %v685 = vld [vmem:[%s442 + $0x4] sm:$0xf]
        %v686 = vld [vmem:[%s442 + $0x8] sm:$0xf]
        %v687 = vld [vmem:[%s442 + $0xc] sm:$0xf]
        %v688 = vld [vmem:[%s462] sm:$0xf]
        %v689 = vunpack.c.l.bf16 %v688
        %vm690 = vcmask 64512
        %v692 = vsel %vm690, %v680, 0
        %v695 = vsel %vm690, %v684, 0
        %697 = vmatpush.bf16.xpose.msra.mxu0 0
        %698 = vmatpush.bf16.xpose.msra.mxu0 0
        %699 = vmatpush.bf16.xpose.msra.mxu0 0
        %700 = vmatpush.bf16.xpose.msra.mxu0 0
        %701 = vmatpush.bf16.xpose.msra.mxu0 0
        %702 = vmatpush.bf16.xpose.msra.mxu0 0
        %703 = vmatpush.bf16.xpose.msra.mxu0 0
        %704 = vmatpush.bf16.xpose.msra.mxu0 %v695
        %705 = vmatmul.bf16.gmra.mxu0 %v692
        %v706 = vpop.f32.mrf.mxu0
        %v707 = vadd.f32 %v689, %v706
        %v708 = vpop.f32.mrf.mxu0
        %709 = vdwg.mxu0
        %v711 = vsel %vm690, %v681, 0
        %v714 = vsel %vm690, %v685, 0
        %716 = vmatpush.bf16.xpose.msra.mxu0 0
        %717 = vmatpush.bf16.xpose.msra.mxu0 0
        %718 = vmatpush.bf16.xpose.msra.mxu0 0
        %719 = vmatpush.bf16.xpose.msra.mxu0 0
        %720 = vmatpush.bf16.xpose.msra.mxu0 0
        %721 = vmatpush.bf16.xpose.msra.mxu0 0
        %722 = vmatpush.bf16.xpose.msra.mxu0 0
        %723 = vmatpush.bf16.xpose.msra.mxu0 %v714
        %724 = vmatmul.bf16.gmra.mxu0 %v711
        %v725 = vpop.f32.mrf.mxu0
        %v726 = vadd.f32 %v689, %v725
        %v727 = vpop.f32.mrf.mxu0
        %728 = vdwg.mxu0
        %v730 = vsel %vm690, %v682, 0
        %v733 = vsel %vm690, %v686, 0
        %735 = vmatpush.bf16.xpose.msra.mxu0 0
        %736 = vmatpush.bf16.xpose.msra.mxu0 0
        %737 = vmatpush.bf16.xpose.msra.mxu0 0
        %738 = vmatpush.bf16.xpose.msra.mxu0 0
        %739 = vmatpush.bf16.xpose.msra.mxu0 0
        %740 = vmatpush.bf16.xpose.msra.mxu0 0
        %741 = vmatpush.bf16.xpose.msra.mxu0 0
        %742 = vmatpush.bf16.xpose.msra.mxu0 %v733
        %743 = vmatmul.bf16.gmra.mxu0 %v730
        %v744 = vpop.f32.mrf.mxu0
        %v745 = vadd.f32 %v689, %v744
        %v746 = vpop.f32.mrf.mxu0
        %747 = vdwg.mxu0
        %v749 = vsel %vm690, %v683, 0
        %v752 = vsel %vm690, %v687, 0
        %754 = vmatpush.bf16.xpose.msra.mxu0 0
        %755 = vmatpush.bf16.xpose.msra.mxu0 0
        %756 = vmatpush.bf16.xpose.msra.mxu0 0
        %757 = vmatpush.bf16.xpose.msra.mxu0 0
        %758 = vmatpush.bf16.xpose.msra.mxu0 0
        %759 = vmatpush.bf16.xpose.msra.mxu0 0
        %760 = vmatpush.bf16.xpose.msra.mxu0 0
        %761 = vmatpush.bf16.xpose.msra.mxu0 %v752
        %762 = vmatmul.bf16.gmra.mxu0 %v749
        %v763 = vpop.f32.mrf.mxu0
        %v764 = vadd.f32 %v689, %v763
        %v765 = vpop.f32.mrf.mxu0
        %766 = vdwg.mxu0
        %v767 = vsel %vm690, %v707, -inf
        %768 = vmax.xlane.f32.xlu0 %v767
        %v769 = vpop.xlane.xlu0 %768
        %v770 = vsel %vm690, %v726, -inf
        %771 = vmax.xlane.f32.xlu0 %v770
        %v772 = vpop.xlane.xlu0 %771
        %v773 = vsel %vm690, %v745, -inf
        %774 = vmax.xlane.f32.xlu0 %v773
        %v775 = vpop.xlane.xlu0 %774
        %v776 = vsel %vm690, %v764, -inf
        %777 = vmax.xlane.f32.xlu0 %v776
        %v778 = vpop.xlane.xlu0 %777
        %v779 = vsub.f32 %v707, %v769
        %v780 = vsub.f32 %v726, %v772
        %v781 = vsub.f32 %v745, %v775
        %v782 = vsub.f32 %v764, %v778
        %v783 = vmul.f32 %v779, 1.442695
        %v784 = vpow.pop %v783
        %v785 = vmul.f32 %v780, 1.442695
        %v786 = vpow.pop %v785
        %v787 = vmul.f32 %v781, 1.442695
        %v788 = vpow.pop %v787
        %v789 = vmul.f32 %v782, 1.442695
        %v790 = vpow.pop %v789
        %v791 = vpack.c.bf16 %v784, %v784
        %v792 = vpack.c.bf16 %v786, %v786
        %v793 = vpack.c.bf16 %v788, %v788
        %v794 = vpack.c.bf16 %v790, %v790
        %v795 = vunpack.c.l.bf16 %v791
        %v796 = vunpack.c.l.bf16 %v792
        %v797 = vunpack.c.l.bf16 %v793
        %v798 = vunpack.c.l.bf16 %v794
        %v799 = vsel %vm690, %v795, 0.0
        %800 = vadd.xlane.f32.xlu0 %v799
        %v801 = vpop.xlane.xlu0 %800
        %v802 = vsel %vm690, %v796, 0.0
        %803 = vadd.xlane.f32.xlu0 %v802
        %v804 = vpop.xlane.xlu0 %803
        %v805 = vsel %vm690, %v797, 0.0
        %806 = vadd.xlane.f32.xlu0 %v805
        %v807 = vpop.xlane.xlu0 %806
        %v808 = vsel %vm690, %v798, 0.0
        %809 = vadd.xlane.f32.xlu0 %v808
        %v810 = vpop.xlane.xlu0 %809
        %v811 = vld [vmem:[%s452] sm:$0xf]
        %v812 = vld [vmem:[%s452 + $0x4] sm:$0xf]
        %v813 = vld [vmem:[%s452 + $0x8] sm:$0xf]
        %v814 = vld [vmem:[%s452 + $0xc] sm:$0xf]
        %v816 = vsel %vm690, %v791, 0
        %vm818 = vcmask 1043456
        %v820 = vsel %vm818, %v811, 0
        %822 = vmatpush.bf16.msra.mxu0 0
        %823 = vmatpush.bf16.msra.mxu0 0
        %824 = vmatpush.bf16.msra.mxu0 0
        %825 = vmatpush.bf16.msra.mxu0 0
        %826 = vmatpush.bf16.msra.mxu0 0
        %827 = vmatpush.bf16.msra.mxu0 0
        %828 = vmatpush.bf16.msra.mxu0 0
        %829 = vmatpush.bf16.msra.mxu0 %v820
        %830 = vmatmul.bf16.gmra.mxu0 %v816
        %v831 = vpop.f32.mrf.mxu0
        %v832 = vadd.f32 0.0, %v831
        %v833 = vpop.f32.mrf.mxu0
        %834 = vdwg.mxu0
        %v836 = vsel %vm690, %v792, 0
        %v839 = vsel %vm818, %v812, 0
        %841 = vmatpush.bf16.msra.mxu0 0
        %842 = vmatpush.bf16.msra.mxu0 0
        %843 = vmatpush.bf16.msra.mxu0 0
        %844 = vmatpush.bf16.msra.mxu0 0
        %845 = vmatpush.bf16.msra.mxu0 0
        %846 = vmatpush.bf16.msra.mxu0 0
        %847 = vmatpush.bf16.msra.mxu0 0
        %848 = vmatpush.bf16.msra.mxu0 %v839
        %849 = vmatmul.bf16.gmra.mxu0 %v836
        %v850 = vpop.f32.mrf.mxu0
        %v851 = vadd.f32 0.0, %v850
        %v852 = vpop.f32.mrf.mxu0
        %853 = vdwg.mxu0
        %v855 = vsel %vm690, %v793, 0
        %v858 = vsel %vm818, %v813, 0
        %860 = vmatpush.bf16.msra.mxu0 0
        %861 = vmatpush.bf16.msra.mxu0 0
        %862 = vmatpush.bf16.msra.mxu0 0
        %863 = vmatpush.bf16.msra.mxu0 0
        %864 = vmatpush.bf16.msra.mxu0 0
        %865 = vmatpush.bf16.msra.mxu0 0
        %866 = vmatpush.bf16.msra.mxu0 0
        %867 = vmatpush.bf16.msra.mxu0 %v858
        %868 = vmatmul.bf16.gmra.mxu0 %v855
        %v869 = vpop.f32.mrf.mxu0
        %v870 = vadd.f32 0.0, %v869
        %v871 = vpop.f32.mrf.mxu0
        %872 = vdwg.mxu0
        %v874 = vsel %vm690, %v794, 0
        %v877 = vsel %vm818, %v814, 0
        %879 = vmatpush.bf16.msra.mxu0 0
        %880 = vmatpush.bf16.msra.mxu0 0
        %881 = vmatpush.bf16.msra.mxu0 0
        %882 = vmatpush.bf16.msra.mxu0 0
        %883 = vmatpush.bf16.msra.mxu0 0
        %884 = vmatpush.bf16.msra.mxu0 0
        %885 = vmatpush.bf16.msra.mxu0 0
        %886 = vmatpush.bf16.msra.mxu0 %v877
        %887 = vmatmul.bf16.gmra.mxu0 %v874
        %v888 = vpop.f32.mrf.mxu0
        %v889 = vadd.f32 0.0, %v888
        %v890 = vpop.f32.mrf.mxu0
        %891 = vdwg.mxu0
        %v892 = vrcp.pop %v801
        %v893 = vrcp.pop %v804
        %v894 = vrcp.pop %v807
        %v895 = vrcp.pop %v810
        %v896 = vmul.f32 %v832, %v892
        %v897 = vmul.f32 %v851, %v893
        %v898 = vmul.f32 %v870, %v894
        %v899 = vmul.f32 %v889, %v895
        %v900 = vpack.c.bf16 %v896, %v896
        %v901 = vpack.c.bf16 %v897, %v897
        %v902 = vpack.c.bf16 %v898, %v898
        %v903 = vpack.c.bf16 %v899, %v899
        %v904 = vld [vmem:[#allocation11] sm:$0xf]
        %v905 = vld [vmem:[#allocation11 + $0x4] sm:$0xf]
        %v906 = vld [vmem:[#allocation11 + $0x8] sm:$0xf]
        %v907 = vld [vmem:[#allocation11 + $0xc] sm:$0xf]
        %v909 = vsel %vm690, %v900, 0
        %v912 = vsel %vm818, %v904, 0
        %914 = vmatpush.bf16.msra.mxu0 0
        %915 = vmatpush.bf16.msra.mxu0 0
        %916 = vmatpush.bf16.msra.mxu0 0
        %917 = vmatpush.bf16.msra.mxu0 0
        %918 = vmatpush.bf16.msra.mxu0 0
        %919 = vmatpush.bf16.msra.mxu0 0
        %920 = vmatpush.bf16.msra.mxu0 0
        %921 = vmatpush.bf16.msra.mxu0 %v912
        %922 = vmatmul.bf16.gmra.mxu0 %v909
        %v923 = vpop.f32.mrf.mxu0
        %v924 = vadd.f32 0.0, %v923
        %v925 = vpop.f32.mrf.mxu0
        %926 = vdwg.mxu0
        %v928 = vsel %vm690, %v901, 0
        %v931 = vsel %vm818, %v905, 0
        %933 = vmatpush.bf16.msra.mxu0 0
        %934 = vmatpush.bf16.msra.mxu0 0
        %935 = vmatpush.bf16.msra.mxu0 0
        %936 = vmatpush.bf16.msra.mxu0 0
        %937 = vmatpush.bf16.msra.mxu0 0
        %938 = vmatpush.bf16.msra.mxu0 0
        %939 = vmatpush.bf16.msra.mxu0 0
        %940 = vmatpush.bf16.msra.mxu0 %v931
        %941 = vmatmul.bf16.gmra.mxu0 %v928
        %v942 = vpop.f32.mrf.mxu0
        %v943 = vadd.f32 0.0, %v942
        %v944 = vpop.f32.mrf.mxu0
        %945 = vdwg.mxu0
        %v947 = vsel %vm690, %v902, 0
        %v950 = vsel %vm818, %v906, 0
        %952 = vmatpush.bf16.msra.mxu0 0
        %953 = vmatpush.bf16.msra.mxu0 0
        %954 = vmatpush.bf16.msra.mxu0 0
        %955 = vmatpush.bf16.msra.mxu0 0
        %956 = vmatpush.bf16.msra.mxu0 0
        %957 = vmatpush.bf16.msra.mxu0 0
        %958 = vmatpush.bf16.msra.mxu0 0
        %959 = vmatpush.bf16.msra.mxu0 %v950
        %960 = vmatmul.bf16.gmra.mxu0 %v947
        %v961 = vpop.f32.mrf.mxu0
        %v962 = vadd.f32 0.0, %v961
        %v963 = vpop.f32.mrf.mxu0
        %964 = vdwg.mxu0
        %v966 = vsel %vm690, %v903, 0
        %v969 = vsel %vm818, %v907, 0
        %971 = vmatpush.bf16.msra.mxu0 0
        %972 = vmatpush.bf16.msra.mxu0 0
        %973 = vmatpush.bf16.msra.mxu0 0
        %974 = vmatpush.bf16.msra.mxu0 0
        %975 = vmatpush.bf16.msra.mxu0 0
        %976 = vmatpush.bf16.msra.mxu0 0
        %977 = vmatpush.bf16.msra.mxu0 0
        %978 = vmatpush.bf16.msra.mxu0 %v969
        %979 = vmatmul.bf16.gmra.mxu0 %v966
        %v980 = vpop.f32.mrf.mxu0
        %v981 = vadd.f32 0.0, %v980
        %v982 = vpop.f32.mrf.mxu0
        %983 = vdwg.mxu0
        %v984 = vsel %vm542, %v924, 0.0
        %v985 = vsel %vm542, %v943, 0.0
        %v986 = vadd.f32 %v984, %v985
        %v987 = vsel %vm542, %v962, 0.0
        %v988 = vadd.f32 %v986, %v987
        %v989 = vsel %vm542, %v981, 0.0
        %v990 = vadd.f32 %v988, %v989
        %v991 = vld [vmem:[%s6] sm:$0x1]
        %v993 = vperm.slane %v991, 0
        %v995 = vadd.f32 %v990, %v993
        %v996 = vadd.f32 %v995, %v524
        %v997 = vsel %vm542, %v996, 0.0
        %998 = vadd.xlane.f32.xlu0 %v997
        %v999 = vpop.xlane.xlu0 %998
        %v1000 = vrcp.pop 32.0
        %v1001 = vmul.f32 32.0, %v1000
        %v1002 = vsub.f32 1.0, %v1001
        %v1003 = vmul.f32 %v1000, %v1002
        %v1004 = vadd.f32 %v1000, %v1003
        %vm1005 = vweird.f32 %v1000
        %v1006 = vsel %vm1005, %v1000, %v1004
        %v1007 = vmul.f32 %v999, %v1006
        %v1008 = vsub.f32 %v996, %v1007
        %v1009 = vmul.f32 %v1008, %v1008
        %v1010 = vsel %vm542, %v1009, 0.0
        %1011 = vadd.xlane.f32.xlu0 %v1010
        %v1012 = vpop.xlane.xlu0 %1011
        %v1013 = vmul.f32 %v1012, 0.032258064
        %v1014 = vadd.f32 %v1013, 1e-05
        %v1015 = vrsqrt.pop %v1014
        %v1016 = vmul.f32 %v1015, %v1014
        %v1017 = vmul.f32 %v1016, %v1015
        %v1018 = vmul.f32 0.5, %v1017
        %v1019 = vsub.f32 1.5, %v1018
        %v1020 = vmul.f32 %v1015, %v1019
        %vm1021 = vweird.f32 %v1014
        %vm1022 = vweird.f32 %v1015
        %vm1023 = vmor %vm1021, %vm1022
        %v1024 = vsel %vm1023, %v1015, %v1020
        %v1025 = vmul.f32 %v1008, %v1024
        %v1026 = vld [vmem:[%s7] sm:$0x1]
        %v1028 = vperm.slane %v1026, 0
        %v1030 = vmul.f32 %v1028, %v1025
        %v1031 = vld [vmem:[%s8] sm:$0x1]
        %v1033 = vperm.slane %v1031, 0
        %v1035 = vadd.f32 %v1030, %v1033
        %1036 = vst.msk [vmem:[%s522] sm:$0xff] %vm542, %v1035
        %s1037 = sand.u32 %s268, 1
        %s1038 = scalar_lea.sflag [#allocation4], %s1037
        %s1039 = sand.u32 %s268, 1
        %s1040 = smul.addr %s1039, 8
        %s1041 = scalar_lea.vmem [#allocation13], %s1040
        // Predicated region
        $region81: #{tpu_custom_call.1} parent=55 // pred_check
          %p1042 = pneg %p278
        $region82: #{tpu_custom_call.1} parent=55 // pred_check_branch
          %1044 = sbr.rel (%p1042) target = $region84
        $region83: #{tpu_custom_call.1} parent=55 // pred_region
          %1046 = vsyncadd %s1038, 0
          %s1047 = sadd.s32 %s38, %s37
          %s1048 = smul.addr %s1047, 8
          %s1049 = scalar_lea.hbm %s9, %s1048
          %s1051 = sshll.u32 %s1041, 4
          %s1052 = int_to_ptr.vmem [resolvable:$true] %s1051
          %s1053 = sshll.u32 %s1049, 4
          %s1054 = int_to_ptr.hbm [resolvable:$true] %s1053
          %1056 = dma.vmem_to_hbm [thread:$0]  %s1052, 128, %s1054, %s1038
        $region84: #{tpu_custom_call.1} parent=55 // pred_fallthru
          _
      $region56: #{tpu_custom_call.1} parent=5 // pred_fallthru
        _
      %p1057 = scmp.le.s32.totalorder 2, %s28
      // Predicated region
      $region85: #{tpu_custom_call.1} parent=5 // pred_check
        %p1058 = pneg %p1057
      $region86: #{tpu_custom_call.1} parent=5 // pred_check_branch
        %1060 = sbr.rel (%p1058) target = $region88
      $region87: #{tpu_custom_call.1} parent=5 // pred_region
        %s1061 = ssub.s32 %s28, 2
        // Predicated region
        $region89: #{tpu_custom_call.1} parent=87 // pred_check
          %p1062 = pneg %p284
        $region90: #{tpu_custom_call.1} parent=87 // pred_check_branch
          %1064 = sbr.rel (%p1062) target = $region92
        $region91: #{tpu_custom_call.1} parent=87 // pred_region
          %s1065 = sand.u32 %s269, 1
          %s1066 = scalar_lea.sflag [#allocation4], %s1065
          %s1067 = sand.u32 %s269, 1
          %s1068 = smul.addr %s1067, 8
          %s1069 = scalar_lea.vmem [#allocation13], %s1068
          %1071 = dma.done %s1066, 128
        $region92: #{tpu_custom_call.1} parent=87 // pred_fallthru
          _
      $region88: #{tpu_custom_call.1} parent=5 // pred_fallthru
        _
    $region6: #{tpu_custom_call.1} parent=1 // loop_footer
      %s32 = sadd.s32 1, %s28
    $region7: #{tpu_custom_call.1} parent=1 // loop_footer_branch
      %27 = sbr.rel target = $region3
    $region8: #{tpu_custom_call.1} parent=1 // loop_exit
      _
    %1072 = vsyncpa [#allocation3], 1
    %s1073 = scalar_lea.sflag [#allocation3], 1
    %1074 = vsyncpa %s1073, 1
    %1075 = vsyncpa [#allocation6], 1
    %s1076 = scalar_lea.sflag [#allocation6], 1
    %1077 = vsyncpa %s1076, 1
    %1078 = vsyncpa [#allocation9], 1
    %s1079 = scalar_lea.sflag [#allocation9], 1
    %1080 = vsyncpa %s1079, 1
    %1081 = vsyncpa [#allocation12], 1
    %1082 = vsyncpa [#allocation4], 1
    %s1083 = scalar_lea.sflag [#allocation4], 1
    %1084 = vsyncpa %s1083, 1

</llo_original>
